<compile_context>
chip_gen: v5e
topology: v5e:2x2
jax: 0.10.0
libtpu: 0.0.40
codegen_flags: <defaults>
</compile_context>

<pallas_src>
import functools

import jax
import jax.numpy as jnp
from jax.experimental import pallas as pl
from jax.experimental.pallas import tpu as pltpu


def _pairwise_sum(terms):
    """Balanced add tree: log2(n) dependent adds instead of n-1."""
    while len(terms) > 1:
        nxt = [terms[i] + terms[i + 1] for i in range(0, len(terms) - 1, 2)]
        if len(terms) % 2:
            nxt.append(terms[-1])
        terms = nxt
    return terms[0]


def mps_kernel(x_ref, cores_ref, se_ref, w_ref, b_ref, out_ref,
               *, n_sites, feature_dim, bond_dim):
    S, F, D = n_sites, feature_dim, bond_dim
    xv = x_ref[...]                                    # [B, S, F]

    # ---- (1) Per-site transfer matrices, built in parallel on the VPU ----
    # M_s[b, d, r] = sum_f x[b, s, f] * core_s[d, f, r]
    # cores_ref is [S*F, D, D] with cores_ref[s*F + f] == core_s[:, f, :].
    def site_matrix(s):
        terms = []
        for f in range(F):
            xs = xv[:, s:s + 1, f:f + 1]               # [B, 1, 1]
            terms.append(xs * cores_ref[s * F + f])    # broadcast -> [B, D, D]
        return _pairwise_sum(terms)

    mats = [site_matrix(s) for s in range(S)]          # S independent [B, D, D]

    # ---- (2) log2(S)-deep pairwise tree of batched [D,D] @ [D,D] products ----
    def bmm(a, b):                                     # c[n,i,j] = sum_k a[n,i,k]*b[n,k,j]
        terms = [a[:, :, k:k + 1] * b[:, k:k + 1, :] for k in range(D)]
        return _pairwise_sum(terms)

    while len(mats) > 1:
        nxt = [bmm(mats[i], mats[i + 1]) for i in range(0, len(mats) - 1, 2)]
        if len(mats) % 2:
            nxt.append(mats[-1])
        mats = nxt
    prod = mats[0]                                     # [B, D, D]

    # ---- (3) scalar_b = start @ prod_b @ end = sum_{d,r} prod[b,d,r] * se[d,r] ----
    weighted = prod * se_ref[...][None, :, :]          # [B, D, D]
    s_row = jnp.sum(weighted, axis=2)                  # [B, D]
    s_val = jnp.sum(s_row, axis=1, keepdims=True)      # [B, 1]

    # ---- (4) fc: Linear(1, O) ----
    out_ref[...] = s_val * w_ref[...] + b_ref[...]     # [B, O]


def make_mps_params(cores, start, end, fc_w, fc_b):
    """One-time (module-init) parameter preprocessing — NOT in the per-call path."""
    S, D, F, _ = cores.shape
    O = fc_w.shape[0]
    # cores_r[s*F + f, d, r] = cores[s, d, f, r]
    cores_r = jnp.transpose(cores, (0, 2, 1, 3)).reshape(S * F, D, D)
    se = start.reshape(D, 1) * end.reshape(1, D)        # se[d, r] = start[0,d] * end[r,0]
    w_row = fc_w.reshape(1, O)                          # Linear(1,O) weight as a row
    b_row = fc_b.reshape(1, O)
    return dict(cores=cores_r, se=se, w=w_row, b=b_row,
                n_sites=S, feature_dim=F, bond_dim=D, output_dim=O)


def mps_memory_encoder(params, x):
    """x: [B, S, F] f32 -> [B, O] f32. Per-call work is a single pallas_call."""
    B, S, F = x.shape
    assert S == params["n_sites"] and F == params["feature_dim"]
    D, O = params["bond_dim"], params["output_dim"]
    kernel = functools.partial(mps_kernel, n_sites=S, feature_dim=F, bond_dim=D)
    vmem = pl.BlockSpec(memory_space=pltpu.MemorySpace.VMEM)
    return pl.pallas_call(
        kernel,
        out_shape=jax.ShapeDtypeStruct((B, O), jnp.float32),
        in_specs=[vmem] * 5,
        out_specs=vmem,
    )(x, params["cores"], params["se"], params["w"], params["b"])


def mps_memory_encoder_ref(x, cores, start, end, fc_w, fc_b):
    """Pure-JAX reference mirroring the PyTorch forward (full f32 precision)."""
    B = x.shape[0]
    D = start.shape[1]
    hi = jax.lax.Precision.HIGHEST
    v = jnp.broadcast_to(start, (B, D))[:, None, :]     # [B, 1, D]
    for i in range(cores.shape[0]):
        M = jnp.einsum('bf,dfr->bdr', x[:, i, :], cores[i], precision=hi)
        v = jnp.einsum('bod,bdr->bor', v, M, precision=hi)
    s = jnp.einsum('bod,dk->bok', v, end, precision=hi).reshape(B, 1)
    return s @ fc_w.T + fc_b[None, :]


if __name__ == "__main__":
    # input_dim (n_sites) = 8, feature_dim = 4, bond_dim = 8, output_dim = 32, batch = 2.
    B, S, F, D, O = 2, 8, 4, 8, 32

    key = jax.random.PRNGKey(0)
    kx, kc, ks, ke, kw, kb = jax.random.split(key, 6)

    x = jax.random.normal(kx, (B, S, F), dtype=jnp.float32)
    cores = jax.random.normal(kc, (S, D, F, D), dtype=jnp.float32) * 0.3
    start = jax.random.normal(ks, (1, D), dtype=jnp.float32)
    end = jax.random.normal(ke, (D, 1), dtype=jnp.float32)
    fc_w = jax.random.normal(kw, (O, 1), dtype=jnp.float32)
    fc_b = jax.random.normal(kb, (O,), dtype=jnp.float32)

    # "Module init": parameter prep happens once, off the per-call hot path.
    params = make_mps_params(cores, start, end, fc_w, fc_b)
    params = jax.tree_util.tree_map(
        lambda a: jax.block_until_ready(a) if isinstance(a, jax.Array) else a, params)

    out = mps_memory_encoder(params, x)
    out = jax.block_until_ready(out)

    ref = mps_memory_encoder_ref(x, cores, start, end, fc_w, fc_b)
    assert out.shape == (B, O), out.shape
    assert jnp.allclose(out, ref, rtol=1e-4, atol=1e-4), (
        f"max abs err {jnp.max(jnp.abs(out - ref))}")

    print("KERNEL_OK")
</pallas_src>

<mosaic_0001>
module attributes {stable_mosaic.version = 11 : i64} {
  func.func @mps_kernel(%arg0: memref<2x8x4xf32, #tpu.memory_space<vmem>>, %arg1: memref<32x8x8xf32, #tpu.memory_space<vmem>>, %arg2: memref<8x8xf32, #tpu.memory_space<vmem>>, %arg3: memref<1x32xf32, #tpu.memory_space<vmem>>, %arg4: memref<1x32xf32, #tpu.memory_space<vmem>>, %arg5: memref<2x32xf32, #tpu.memory_space<vmem>>) attributes {dimension_semantics = [], scalar_prefetch = 0 : i64, scratch_operands = 0 : i64, tpu.core_type = #tpu.core_type<tc>} {
    %c0 = arith.constant 0 : index
    %c0_0 = arith.constant 0 : index
    %c0_1 = arith.constant 0 : index
    %0 = vector.load %arg0[%c0, %c0_0, %c0_1] : memref<2x8x4xf32, #tpu.memory_space<vmem>>, vector<2x8x4xf32>
    %1 = vector.extract_strided_slice %0 {offsets = [0, 0, 0], sizes = [2, 1, 1], strides = [1, 1, 1]} : vector<2x8x4xf32> to vector<2x1x1xf32>
    %c0_2 = arith.constant 0 : index
    %c0_3 = arith.constant 0 : index
    %c0_4 = arith.constant 0 : index
    %2 = vector.load %arg1[%c0_2, %c0_3, %c0_4] : memref<32x8x8xf32, #tpu.memory_space<vmem>>, vector<1x8x8xf32>
    %3 = vector.shape_cast %2 : vector<1x8x8xf32> to vector<8x8xf32>
    %4 = vector.shape_cast %3 : vector<8x8xf32> to vector<1x8x8xf32>
    %5 = vector.broadcast %1 : vector<2x1x1xf32> to vector<2x8x8xf32>
    %6 = vector.broadcast %4 : vector<1x8x8xf32> to vector<2x8x8xf32>
    %7 = arith.mulf %5, %6 : vector<2x8x8xf32>
    %8 = vector.extract_strided_slice %0 {offsets = [0, 0, 1], sizes = [2, 1, 1], strides = [1, 1, 1]} : vector<2x8x4xf32> to vector<2x1x1xf32>
    %c1 = arith.constant 1 : index
    %c0_5 = arith.constant 0 : index
    %c0_6 = arith.constant 0 : index
    %9 = vector.load %arg1[%c1, %c0_5, %c0_6] : memref<32x8x8xf32, #tpu.memory_space<vmem>>, vector<1x8x8xf32>
    %10 = vector.shape_cast %9 : vector<1x8x8xf32> to vector<8x8xf32>
    %11 = vector.shape_cast %10 : vector<8x8xf32> to vector<1x8x8xf32>
    %12 = vector.broadcast %8 : vector<2x1x1xf32> to vector<2x8x8xf32>
    %13 = vector.broadcast %11 : vector<1x8x8xf32> to vector<2x8x8xf32>
    %14 = arith.mulf %12, %13 : vector<2x8x8xf32>
    %15 = vector.extract_strided_slice %0 {offsets = [0, 0, 2], sizes = [2, 1, 1], strides = [1, 1, 1]} : vector<2x8x4xf32> to vector<2x1x1xf32>
    %c2 = arith.constant 2 : index
    %c0_7 = arith.constant 0 : index
    %c0_8 = arith.constant 0 : index
    %16 = vector.load %arg1[%c2, %c0_7, %c0_8] : memref<32x8x8xf32, #tpu.memory_space<vmem>>, vector<1x8x8xf32>
    %17 = vector.shape_cast %16 : vector<1x8x8xf32> to vector<8x8xf32>
    %18 = vector.shape_cast %17 : vector<8x8xf32> to vector<1x8x8xf32>
    %19 = vector.broadcast %15 : vector<2x1x1xf32> to vector<2x8x8xf32>
    %20 = vector.broadcast %18 : vector<1x8x8xf32> to vector<2x8x8xf32>
    %21 = arith.mulf %19, %20 : vector<2x8x8xf32>
    %22 = vector.extract_strided_slice %0 {offsets = [0, 0, 3], sizes = [2, 1, 1], strides = [1, 1, 1]} : vector<2x8x4xf32> to vector<2x1x1xf32>
    %c3 = arith.constant 3 : index
    %c0_9 = arith.constant 0 : index
    %c0_10 = arith.constant 0 : index
    %23 = vector.load %arg1[%c3, %c0_9, %c0_10] : memref<32x8x8xf32, #tpu.memory_space<vmem>>, vector<1x8x8xf32>
    %24 = vector.shape_cast %23 : vector<1x8x8xf32> to vector<8x8xf32>
    %25 = vector.shape_cast %24 : vector<8x8xf32> to vector<1x8x8xf32>
    %26 = vector.broadcast %22 : vector<2x1x1xf32> to vector<2x8x8xf32>
    %27 = vector.broadcast %25 : vector<1x8x8xf32> to vector<2x8x8xf32>
    %28 = arith.mulf %26, %27 : vector<2x8x8xf32>
    %29 = arith.addf %7, %14 : vector<2x8x8xf32>
    %30 = arith.addf %21, %28 : vector<2x8x8xf32>
    %31 = arith.addf %29, %30 : vector<2x8x8xf32>
    %32 = vector.extract_strided_slice %0 {offsets = [0, 1, 0], sizes = [2, 1, 1], strides = [1, 1, 1]} : vector<2x8x4xf32> to vector<2x1x1xf32>
    %c4 = arith.constant 4 : index
    %c0_11 = arith.constant 0 : index
    %c0_12 = arith.constant 0 : index
    %33 = vector.load %arg1[%c4, %c0_11, %c0_12] : memref<32x8x8xf32, #tpu.memory_space<vmem>>, vector<1x8x8xf32>
    %34 = vector.shape_cast %33 : vector<1x8x8xf32> to vector<8x8xf32>
    %35 = vector.shape_cast %34 : vector<8x8xf32> to vector<1x8x8xf32>
    %36 = vector.broadcast %32 : vector<2x1x1xf32> to vector<2x8x8xf32>
    %37 = vector.broadcast %35 : vector<1x8x8xf32> to vector<2x8x8xf32>
    %38 = arith.mulf %36, %37 : vector<2x8x8xf32>
    %39 = vector.extract_strided_slice %0 {offsets = [0, 1, 1], sizes = [2, 1, 1], strides = [1, 1, 1]} : vector<2x8x4xf32> to vector<2x1x1xf32>
    %c5 = arith.constant 5 : index
    %c0_13 = arith.constant 0 : index
    %c0_14 = arith.constant 0 : index
    %40 = vector.load %arg1[%c5, %c0_13, %c0_14] : memref<32x8x8xf32, #tpu.memory_space<vmem>>, vector<1x8x8xf32>
    %41 = vector.shape_cast %40 : vector<1x8x8xf32> to vector<8x8xf32>
    %42 = vector.shape_cast %41 : vector<8x8xf32> to vector<1x8x8xf32>
    %43 = vector.broadcast %39 : vector<2x1x1xf32> to vector<2x8x8xf32>
    %44 = vector.broadcast %42 : vector<1x8x8xf32> to vector<2x8x8xf32>
    %45 = arith.mulf %43, %44 : vector<2x8x8xf32>
    %46 = vector.extract_strided_slice %0 {offsets = [0, 1, 2], sizes = [2, 1, 1], strides = [1, 1, 1]} : vector<2x8x4xf32> to vector<2x1x1xf32>
    %c6 = arith.constant 6 : index
    %c0_15 = arith.constant 0 : index
    %c0_16 = arith.constant 0 : index
    %47 = vector.load %arg1[%c6, %c0_15, %c0_16] : memref<32x8x8xf32, #tpu.memory_space<vmem>>, vector<1x8x8xf32>
    %48 = vector.shape_cast %47 : vector<1x8x8xf32> to vector<8x8xf32>
    %49 = vector.shape_cast %48 : vector<8x8xf32> to vector<1x8x8xf32>
    %50 = vector.broadcast %46 : vector<2x1x1xf32> to vector<2x8x8xf32>
    %51 = vector.broadcast %49 : vector<1x8x8xf32> to vector<2x8x8xf32>
    %52 = arith.mulf %50, %51 : vector<2x8x8xf32>
    %53 = vector.extract_strided_slice %0 {offsets = [0, 1, 3], sizes = [2, 1, 1], strides = [1, 1, 1]} : vector<2x8x4xf32> to vector<2x1x1xf32>
    %c7 = arith.constant 7 : index
    %c0_17 = arith.constant 0 : index
    %c0_18 = arith.constant 0 : index
    %54 = vector.load %arg1[%c7, %c0_17, %c0_18] : memref<32x8x8xf32, #tpu.memory_space<vmem>>, vector<1x8x8xf32>
    %55 = vector.shape_cast %54 : vector<1x8x8xf32> to vector<8x8xf32>
    %56 = vector.shape_cast %55 : vector<8x8xf32> to vector<1x8x8xf32>
    %57 = vector.broadcast %53 : vector<2x1x1xf32> to vector<2x8x8xf32>
    %58 = vector.broadcast %56 : vector<1x8x8xf32> to vector<2x8x8xf32>
    %59 = arith.mulf %57, %58 : vector<2x8x8xf32>
    %60 = arith.addf %38, %45 : vector<2x8x8xf32>
    %61 = arith.addf %52, %59 : vector<2x8x8xf32>
    %62 = arith.addf %60, %61 : vector<2x8x8xf32>
    %63 = vector.extract_strided_slice %0 {offsets = [0, 2, 0], sizes = [2, 1, 1], strides = [1, 1, 1]} : vector<2x8x4xf32> to vector<2x1x1xf32>
    %c8 = arith.constant 8 : index
    %c0_19 = arith.constant 0 : index
    %c0_20 = arith.constant 0 : index
    %64 = vector.load %arg1[%c8, %c0_19, %c0_20] : memref<32x8x8xf32, #tpu.memory_space<vmem>>, vector<1x8x8xf32>
    %65 = vector.shape_cast %64 : vector<1x8x8xf32> to vector<8x8xf32>
    %66 = vector.shape_cast %65 : vector<8x8xf32> to vector<1x8x8xf32>
    %67 = vector.broadcast %63 : vector<2x1x1xf32> to vector<2x8x8xf32>
    %68 = vector.broadcast %66 : vector<1x8x8xf32> to vector<2x8x8xf32>
    %69 = arith.mulf %67, %68 : vector<2x8x8xf32>
    %70 = vector.extract_strided_slice %0 {offsets = [0, 2, 1], sizes = [2, 1, 1], strides = [1, 1, 1]} : vector<2x8x4xf32> to vector<2x1x1xf32>
    %c9 = arith.constant 9 : index
    %c0_21 = arith.constant 0 : index
    %c0_22 = arith.constant 0 : index
    %71 = vector.load %arg1[%c9, %c0_21, %c0_22] : memref<32x8x8xf32, #tpu.memory_space<vmem>>, vector<1x8x8xf32>
    %72 = vector.shape_cast %71 : vector<1x8x8xf32> to vector<8x8xf32>
    %73 = vector.shape_cast %72 : vector<8x8xf32> to vector<1x8x8xf32>
    %74 = vector.broadcast %70 : vector<2x1x1xf32> to vector<2x8x8xf32>
    %75 = vector.broadcast %73 : vector<1x8x8xf32> to vector<2x8x8xf32>
    %76 = arith.mulf %74, %75 : vector<2x8x8xf32>
    %77 = vector.extract_strided_slice %0 {offsets = [0, 2, 2], sizes = [2, 1, 1], strides = [1, 1, 1]} : vector<2x8x4xf32> to vector<2x1x1xf32>
    %c10 = arith.constant 10 : index
    %c0_23 = arith.constant 0 : index
    %c0_24 = arith.constant 0 : index
    %78 = vector.load %arg1[%c10, %c0_23, %c0_24] : memref<32x8x8xf32, #tpu.memory_space<vmem>>, vector<1x8x8xf32>
    %79 = vector.shape_cast %78 : vector<1x8x8xf32> to vector<8x8xf32>
    %80 = vector.shape_cast %79 : vector<8x8xf32> to vector<1x8x8xf32>
    %81 = vector.broadcast %77 : vector<2x1x1xf32> to vector<2x8x8xf32>
    %82 = vector.broadcast %80 : vector<1x8x8xf32> to vector<2x8x8xf32>
    %83 = arith.mulf %81, %82 : vector<2x8x8xf32>
    %84 = vector.extract_strided_slice %0 {offsets = [0, 2, 3], sizes = [2, 1, 1], strides = [1, 1, 1]} : vector<2x8x4xf32> to vector<2x1x1xf32>
    %c11 = arith.constant 11 : index
    %c0_25 = arith.constant 0 : index
    %c0_26 = arith.constant 0 : index
    %85 = vector.load %arg1[%c11, %c0_25, %c0_26] : memref<32x8x8xf32, #tpu.memory_space<vmem>>, vector<1x8x8xf32>
    %86 = vector.shape_cast %85 : vector<1x8x8xf32> to vector<8x8xf32>
    %87 = vector.shape_cast %86 : vector<8x8xf32> to vector<1x8x8xf32>
    %88 = vector.broadcast %84 : vector<2x1x1xf32> to vector<2x8x8xf32>
    %89 = vector.broadcast %87 : vector<1x8x8xf32> to vector<2x8x8xf32>
    %90 = arith.mulf %88, %89 : vector<2x8x8xf32>
    %91 = arith.addf %69, %76 : vector<2x8x8xf32>
    %92 = arith.addf %83, %90 : vector<2x8x8xf32>
    %93 = arith.addf %91, %92 : vector<2x8x8xf32>
    %94 = vector.extract_strided_slice %0 {offsets = [0, 3, 0], sizes = [2, 1, 1], strides = [1, 1, 1]} : vector<2x8x4xf32> to vector<2x1x1xf32>
    %c12 = arith.constant 12 : index
    %c0_27 = arith.constant 0 : index
    %c0_28 = arith.constant 0 : index
    %95 = vector.load %arg1[%c12, %c0_27, %c0_28] : memref<32x8x8xf32, #tpu.memory_space<vmem>>, vector<1x8x8xf32>
    %96 = vector.shape_cast %95 : vector<1x8x8xf32> to vector<8x8xf32>
    %97 = vector.shape_cast %96 : vector<8x8xf32> to vector<1x8x8xf32>
    %98 = vector.broadcast %94 : vector<2x1x1xf32> to vector<2x8x8xf32>
    %99 = vector.broadcast %97 : vector<1x8x8xf32> to vector<2x8x8xf32>
    %100 = arith.mulf %98, %99 : vector<2x8x8xf32>
    %101 = vector.extract_strided_slice %0 {offsets = [0, 3, 1], sizes = [2, 1, 1], strides = [1, 1, 1]} : vector<2x8x4xf32> to vector<2x1x1xf32>
    %c13 = arith.constant 13 : index
    %c0_29 = arith.constant 0 : index
    %c0_30 = arith.constant 0 : index
    %102 = vector.load %arg1[%c13, %c0_29, %c0_30] : memref<32x8x8xf32, #tpu.memory_space<vmem>>, vector<1x8x8xf32>
    %103 = vector.shape_cast %102 : vector<1x8x8xf32> to vector<8x8xf32>
    %104 = vector.shape_cast %103 : vector<8x8xf32> to vector<1x8x8xf32>
    %105 = vector.broadcast %101 : vector<2x1x1xf32> to vector<2x8x8xf32>
    %106 = vector.broadcast %104 : vector<1x8x8xf32> to vector<2x8x8xf32>
    %107 = arith.mulf %105, %106 : vector<2x8x8xf32>
    %108 = vector.extract_strided_slice %0 {offsets = [0, 3, 2], sizes = [2, 1, 1], strides = [1, 1, 1]} : vector<2x8x4xf32> to vector<2x1x1xf32>
    %c14 = arith.constant 14 : index
    %c0_31 = arith.constant 0 : index
    %c0_32 = arith.constant 0 : index
    %109 = vector.load %arg1[%c14, %c0_31, %c0_32] : memref<32x8x8xf32, #tpu.memory_space<vmem>>, vector<1x8x8xf32>
    %110 = vector.shape_cast %109 : vector<1x8x8xf32> to vector<8x8xf32>
    %111 = vector.shape_cast %110 : vector<8x8xf32> to vector<1x8x8xf32>
    %112 = vector.broadcast %108 : vector<2x1x1xf32> to vector<2x8x8xf32>
    %113 = vector.broadcast %111 : vector<1x8x8xf32> to vector<2x8x8xf32>
    %114 = arith.mulf %112, %113 : vector<2x8x8xf32>
    %115 = vector.extract_strided_slice %0 {offsets = [0, 3, 3], sizes = [2, 1, 1], strides = [1, 1, 1]} : vector<2x8x4xf32> to vector<2x1x1xf32>
    %c15 = arith.constant 15 : index
    %c0_33 = arith.constant 0 : index
    %c0_34 = arith.constant 0 : index
    %116 = vector.load %arg1[%c15, %c0_33, %c0_34] : memref<32x8x8xf32, #tpu.memory_space<vmem>>, vector<1x8x8xf32>
    %117 = vector.shape_cast %116 : vector<1x8x8xf32> to vector<8x8xf32>
    %118 = vector.shape_cast %117 : vector<8x8xf32> to vector<1x8x8xf32>
    %119 = vector.broadcast %115 : vector<2x1x1xf32> to vector<2x8x8xf32>
    %120 = vector.broadcast %118 : vector<1x8x8xf32> to vector<2x8x8xf32>
    %121 = arith.mulf %119, %120 : vector<2x8x8xf32>
    %122 = arith.addf %100, %107 : vector<2x8x8xf32>
    %123 = arith.addf %114, %121 : vector<2x8x8xf32>
    %124 = arith.addf %122, %123 : vector<2x8x8xf32>
    %125 = vector.extract_strided_slice %0 {offsets = [0, 4, 0], sizes = [2, 1, 1], strides = [1, 1, 1]} : vector<2x8x4xf32> to vector<2x1x1xf32>
    %c16 = arith.constant 16 : index
    %c0_35 = arith.constant 0 : index
    %c0_36 = arith.constant 0 : index
    %126 = vector.load %arg1[%c16, %c0_35, %c0_36] : memref<32x8x8xf32, #tpu.memory_space<vmem>>, vector<1x8x8xf32>
    %127 = vector.shape_cast %126 : vector<1x8x8xf32> to vector<8x8xf32>
    %128 = vector.shape_cast %127 : vector<8x8xf32> to vector<1x8x8xf32>
    %129 = vector.broadcast %125 : vector<2x1x1xf32> to vector<2x8x8xf32>
    %130 = vector.broadcast %128 : vector<1x8x8xf32> to vector<2x8x8xf32>
    %131 = arith.mulf %129, %130 : vector<2x8x8xf32>
    %132 = vector.extract_strided_slice %0 {offsets = [0, 4, 1], sizes = [2, 1, 1], strides = [1, 1, 1]} : vector<2x8x4xf32> to vector<2x1x1xf32>
    %c17 = arith.constant 17 : index
    %c0_37 = arith.constant 0 : index
    %c0_38 = arith.constant 0 : index
    %133 = vector.load %arg1[%c17, %c0_37, %c0_38] : memref<32x8x8xf32, #tpu.memory_space<vmem>>, vector<1x8x8xf32>
    %134 = vector.shape_cast %133 : vector<1x8x8xf32> to vector<8x8xf32>
    %135 = vector.shape_cast %134 : vector<8x8xf32> to vector<1x8x8xf32>
    %136 = vector.broadcast %132 : vector<2x1x1xf32> to vector<2x8x8xf32>
    %137 = vector.broadcast %135 : vector<1x8x8xf32> to vector<2x8x8xf32>
    %138 = arith.mulf %136, %137 : vector<2x8x8xf32>
    %139 = vector.extract_strided_slice %0 {offsets = [0, 4, 2], sizes = [2, 1, 1], strides = [1, 1, 1]} : vector<2x8x4xf32> to vector<2x1x1xf32>
    %c18 = arith.constant 18 : index
    %c0_39 = arith.constant 0 : index
    %c0_40 = arith.constant 0 : index
    %140 = vector.load %arg1[%c18, %c0_39, %c0_40] : memref<32x8x8xf32, #tpu.memory_space<vmem>>, vector<1x8x8xf32>
    %141 = vector.shape_cast %140 : vector<1x8x8xf32> to vector<8x8xf32>
    %142 = vector.shape_cast %141 : vector<8x8xf32> to vector<1x8x8xf32>
    %143 = vector.broadcast %139 : vector<2x1x1xf32> to vector<2x8x8xf32>
    %144 = vector.broadcast %142 : vector<1x8x8xf32> to vector<2x8x8xf32>
    %145 = arith.mulf %143, %144 : vector<2x8x8xf32>
    %146 = vector.extract_strided_slice %0 {offsets = [0, 4, 3], sizes = [2, 1, 1], strides = [1, 1, 1]} : vector<2x8x4xf32> to vector<2x1x1xf32>
    %c19 = arith.constant 19 : index
    %c0_41 = arith.constant 0 : index
    %c0_42 = arith.constant 0 : index
    %147 = vector.load %arg1[%c19, %c0_41, %c0_42] : memref<32x8x8xf32, #tpu.memory_space<vmem>>, vector<1x8x8xf32>
    %148 = vector.shape_cast %147 : vector<1x8x8xf32> to vector<8x8xf32>
    %149 = vector.shape_cast %148 : vector<8x8xf32> to vector<1x8x8xf32>
    %150 = vector.broadcast %146 : vector<2x1x1xf32> to vector<2x8x8xf32>
    %151 = vector.broadcast %149 : vector<1x8x8xf32> to vector<2x8x8xf32>
    %152 = arith.mulf %150, %151 : vector<2x8x8xf32>
    %153 = arith.addf %131, %138 : vector<2x8x8xf32>
    %154 = arith.addf %145, %152 : vector<2x8x8xf32>
    %155 = arith.addf %153, %154 : vector<2x8x8xf32>
    %156 = vector.extract_strided_slice %0 {offsets = [0, 5, 0], sizes = [2, 1, 1], strides = [1, 1, 1]} : vector<2x8x4xf32> to vector<2x1x1xf32>
    %c20 = arith.constant 20 : index
    %c0_43 = arith.constant 0 : index
    %c0_44 = arith.constant 0 : index
    %157 = vector.load %arg1[%c20, %c0_43, %c0_44] : memref<32x8x8xf32, #tpu.memory_space<vmem>>, vector<1x8x8xf32>
    %158 = vector.shape_cast %157 : vector<1x8x8xf32> to vector<8x8xf32>
    %159 = vector.shape_cast %158 : vector<8x8xf32> to vector<1x8x8xf32>
    %160 = vector.broadcast %156 : vector<2x1x1xf32> to vector<2x8x8xf32>
    %161 = vector.broadcast %159 : vector<1x8x8xf32> to vector<2x8x8xf32>
    %162 = arith.mulf %160, %161 : vector<2x8x8xf32>
    %163 = vector.extract_strided_slice %0 {offsets = [0, 5, 1], sizes = [2, 1, 1], strides = [1, 1, 1]} : vector<2x8x4xf32> to vector<2x1x1xf32>
    %c21 = arith.constant 21 : index
    %c0_45 = arith.constant 0 : index
    %c0_46 = arith.constant 0 : index
    %164 = vector.load %arg1[%c21, %c0_45, %c0_46] : memref<32x8x8xf32, #tpu.memory_space<vmem>>, vector<1x8x8xf32>
    %165 = vector.shape_cast %164 : vector<1x8x8xf32> to vector<8x8xf32>
    %166 = vector.shape_cast %165 : vector<8x8xf32> to vector<1x8x8xf32>
    %167 = vector.broadcast %163 : vector<2x1x1xf32> to vector<2x8x8xf32>
    %168 = vector.broadcast %166 : vector<1x8x8xf32> to vector<2x8x8xf32>
    %169 = arith.mulf %167, %168 : vector<2x8x8xf32>
    %170 = vector.extract_strided_slice %0 {offsets = [0, 5, 2], sizes = [2, 1, 1], strides = [1, 1, 1]} : vector<2x8x4xf32> to vector<2x1x1xf32>
    %c22 = arith.constant 22 : index
    %c0_47 = arith.constant 0 : index
    %c0_48 = arith.constant 0 : index
    %171 = vector.load %arg1[%c22, %c0_47, %c0_48] : memref<32x8x8xf32, #tpu.memory_space<vmem>>, vector<1x8x8xf32>
    %172 = vector.shape_cast %171 : vector<1x8x8xf32> to vector<8x8xf32>
    %173 = vector.shape_cast %172 : vector<8x8xf32> to vector<1x8x8xf32>
    %174 = vector.broadcast %170 : vector<2x1x1xf32> to vector<2x8x8xf32>
    %175 = vector.broadcast %173 : vector<1x8x8xf32> to vector<2x8x8xf32>
    %176 = arith.mulf %174, %175 : vector<2x8x8xf32>
    %177 = vector.extract_strided_slice %0 {offsets = [0, 5, 3], sizes = [2, 1, 1], strides = [1, 1, 1]} : vector<2x8x4xf32> to vector<2x1x1xf32>
    %c23 = arith.constant 23 : index
    %c0_49 = arith.constant 0 : index
    %c0_50 = arith.constant 0 : index
    %178 = vector.load %arg1[%c23, %c0_49, %c0_50] : memref<32x8x8xf32, #tpu.memory_space<vmem>>, vector<1x8x8xf32>
    %179 = vector.shape_cast %178 : vector<1x8x8xf32> to vector<8x8xf32>
    %180 = vector.shape_cast %179 : vector<8x8xf32> to vector<1x8x8xf32>
    %181 = vector.broadcast %177 : vector<2x1x1xf32> to vector<2x8x8xf32>
    %182 = vector.broadcast %180 : vector<1x8x8xf32> to vector<2x8x8xf32>
    %183 = arith.mulf %181, %182 : vector<2x8x8xf32>
    %184 = arith.addf %162, %169 : vector<2x8x8xf32>
    %185 = arith.addf %176, %183 : vector<2x8x8xf32>
    %186 = arith.addf %184, %185 : vector<2x8x8xf32>
    %187 = vector.extract_strided_slice %0 {offsets = [0, 6, 0], sizes = [2, 1, 1], strides = [1, 1, 1]} : vector<2x8x4xf32> to vector<2x1x1xf32>
    %c24 = arith.constant 24 : index
    %c0_51 = arith.constant 0 : index
    %c0_52 = arith.constant 0 : index
    %188 = vector.load %arg1[%c24, %c0_51, %c0_52] : memref<32x8x8xf32, #tpu.memory_space<vmem>>, vector<1x8x8xf32>
    %189 = vector.shape_cast %188 : vector<1x8x8xf32> to vector<8x8xf32>
    %190 = vector.shape_cast %189 : vector<8x8xf32> to vector<1x8x8xf32>
    %191 = vector.broadcast %187 : vector<2x1x1xf32> to vector<2x8x8xf32>
    %192 = vector.broadcast %190 : vector<1x8x8xf32> to vector<2x8x8xf32>
    %193 = arith.mulf %191, %192 : vector<2x8x8xf32>
    %194 = vector.extract_strided_slice %0 {offsets = [0, 6, 1], sizes = [2, 1, 1], strides = [1, 1, 1]} : vector<2x8x4xf32> to vector<2x1x1xf32>
    %c25 = arith.constant 25 : index
    %c0_53 = arith.constant 0 : index
    %c0_54 = arith.constant 0 : index
    %195 = vector.load %arg1[%c25, %c0_53, %c0_54] : memref<32x8x8xf32, #tpu.memory_space<vmem>>, vector<1x8x8xf32>
    %196 = vector.shape_cast %195 : vector<1x8x8xf32> to vector<8x8xf32>
    %197 = vector.shape_cast %196 : vector<8x8xf32> to vector<1x8x8xf32>
    %198 = vector.broadcast %194 : vector<2x1x1xf32> to vector<2x8x8xf32>
    %199 = vector.broadcast %197 : vector<1x8x8xf32> to vector<2x8x8xf32>
    %200 = arith.mulf %198, %199 : vector<2x8x8xf32>
    %201 = vector.extract_strided_slice %0 {offsets = [0, 6, 2], sizes = [2, 1, 1], strides = [1, 1, 1]} : vector<2x8x4xf32> to vector<2x1x1xf32>
    %c26 = arith.constant 26 : index
    %c0_55 = arith.constant 0 : index
    %c0_56 = arith.constant 0 : index
    %202 = vector.load %arg1[%c26, %c0_55, %c0_56] : memref<32x8x8xf32, #tpu.memory_space<vmem>>, vector<1x8x8xf32>
    %203 = vector.shape_cast %202 : vector<1x8x8xf32> to vector<8x8xf32>
    %204 = vector.shape_cast %203 : vector<8x8xf32> to vector<1x8x8xf32>
    %205 = vector.broadcast %201 : vector<2x1x1xf32> to vector<2x8x8xf32>
    %206 = vector.broadcast %204 : vector<1x8x8xf32> to vector<2x8x8xf32>
    %207 = arith.mulf %205, %206 : vector<2x8x8xf32>
    %208 = vector.extract_strided_slice %0 {offsets = [0, 6, 3], sizes = [2, 1, 1], strides = [1, 1, 1]} : vector<2x8x4xf32> to vector<2x1x1xf32>
    %c27 = arith.constant 27 : index
    %c0_57 = arith.constant 0 : index
    %c0_58 = arith.constant 0 : index
    %209 = vector.load %arg1[%c27, %c0_57, %c0_58] : memref<32x8x8xf32, #tpu.memory_space<vmem>>, vector<1x8x8xf32>
    %210 = vector.shape_cast %209 : vector<1x8x8xf32> to vector<8x8xf32>
    %211 = vector.shape_cast %210 : vector<8x8xf32> to vector<1x8x8xf32>
    %212 = vector.broadcast %208 : vector<2x1x1xf32> to vector<2x8x8xf32>
    %213 = vector.broadcast %211 : vector<1x8x8xf32> to vector<2x8x8xf32>
    %214 = arith.mulf %212, %213 : vector<2x8x8xf32>
    %215 = arith.addf %193, %200 : vector<2x8x8xf32>
    %216 = arith.addf %207, %214 : vector<2x8x8xf32>
    %217 = arith.addf %215, %216 : vector<2x8x8xf32>
    %218 = vector.extract_strided_slice %0 {offsets = [0, 7, 0], sizes = [2, 1, 1], strides = [1, 1, 1]} : vector<2x8x4xf32> to vector<2x1x1xf32>
    %c28 = arith.constant 28 : index
    %c0_59 = arith.constant 0 : index
    %c0_60 = arith.constant 0 : index
    %219 = vector.load %arg1[%c28, %c0_59, %c0_60] : memref<32x8x8xf32, #tpu.memory_space<vmem>>, vector<1x8x8xf32>
    %220 = vector.shape_cast %219 : vector<1x8x8xf32> to vector<8x8xf32>
    %221 = vector.shape_cast %220 : vector<8x8xf32> to vector<1x8x8xf32>
    %222 = vector.broadcast %218 : vector<2x1x1xf32> to vector<2x8x8xf32>
    %223 = vector.broadcast %221 : vector<1x8x8xf32> to vector<2x8x8xf32>
    %224 = arith.mulf %222, %223 : vector<2x8x8xf32>
    %225 = vector.extract_strided_slice %0 {offsets = [0, 7, 1], sizes = [2, 1, 1], strides = [1, 1, 1]} : vector<2x8x4xf32> to vector<2x1x1xf32>
    %c29 = arith.constant 29 : index
    %c0_61 = arith.constant 0 : index
    %c0_62 = arith.constant 0 : index
    %226 = vector.load %arg1[%c29, %c0_61, %c0_62] : memref<32x8x8xf32, #tpu.memory_space<vmem>>, vector<1x8x8xf32>
    %227 = vector.shape_cast %226 : vector<1x8x8xf32> to vector<8x8xf32>
    %228 = vector.shape_cast %227 : vector<8x8xf32> to vector<1x8x8xf32>
    %229 = vector.broadcast %225 : vector<2x1x1xf32> to vector<2x8x8xf32>
    %230 = vector.broadcast %228 : vector<1x8x8xf32> to vector<2x8x8xf32>
    %231 = arith.mulf %229, %230 : vector<2x8x8xf32>
    %232 = vector.extract_strided_slice %0 {offsets = [0, 7, 2], sizes = [2, 1, 1], strides = [1, 1, 1]} : vector<2x8x4xf32> to vector<2x1x1xf32>
    %c30 = arith.constant 30 : index
    %c0_63 = arith.constant 0 : index
    %c0_64 = arith.constant 0 : index
    %233 = vector.load %arg1[%c30, %c0_63, %c0_64] : memref<32x8x8xf32, #tpu.memory_space<vmem>>, vector<1x8x8xf32>
    %234 = vector.shape_cast %233 : vector<1x8x8xf32> to vector<8x8xf32>
    %235 = vector.shape_cast %234 : vector<8x8xf32> to vector<1x8x8xf32>
    %236 = vector.broadcast %232 : vector<2x1x1xf32> to vector<2x8x8xf32>
    %237 = vector.broadcast %235 : vector<1x8x8xf32> to vector<2x8x8xf32>
    %238 = arith.mulf %236, %237 : vector<2x8x8xf32>
    %239 = vector.extract_strided_slice %0 {offsets = [0, 7, 3], sizes = [2, 1, 1], strides = [1, 1, 1]} : vector<2x8x4xf32> to vector<2x1x1xf32>
    %c31 = arith.constant 31 : index
    %c0_65 = arith.constant 0 : index
    %c0_66 = arith.constant 0 : index
    %240 = vector.load %arg1[%c31, %c0_65, %c0_66] : memref<32x8x8xf32, #tpu.memory_space<vmem>>, vector<1x8x8xf32>
    %241 = vector.shape_cast %240 : vector<1x8x8xf32> to vector<8x8xf32>
    %242 = vector.shape_cast %241 : vector<8x8xf32> to vector<1x8x8xf32>
    %243 = vector.broadcast %239 : vector<2x1x1xf32> to vector<2x8x8xf32>
    %244 = vector.broadcast %242 : vector<1x8x8xf32> to vector<2x8x8xf32>
    %245 = arith.mulf %243, %244 : vector<2x8x8xf32>
    %246 = arith.addf %224, %231 : vector<2x8x8xf32>
    %247 = arith.addf %238, %245 : vector<2x8x8xf32>
    %248 = arith.addf %246, %247 : vector<2x8x8xf32>
    %249 = vector.extract_strided_slice %31 {offsets = [0, 0, 0], sizes = [2, 8, 1], strides = [1, 1, 1]} : vector<2x8x8xf32> to vector<2x8x1xf32>
    %250 = vector.extract_strided_slice %62 {offsets = [0, 0, 0], sizes = [2, 1, 8], strides = [1, 1, 1]} : vector<2x8x8xf32> to vector<2x1x8xf32>
    %251 = vector.broadcast %249 : vector<2x8x1xf32> to vector<2x8x8xf32>
    %252 = vector.broadcast %250 : vector<2x1x8xf32> to vector<2x8x8xf32>
    %253 = arith.mulf %251, %252 : vector<2x8x8xf32>
    %254 = vector.extract_strided_slice %31 {offsets = [0, 0, 1], sizes = [2, 8, 1], strides = [1, 1, 1]} : vector<2x8x8xf32> to vector<2x8x1xf32>
    %255 = vector.extract_strided_slice %62 {offsets = [0, 1, 0], sizes = [2, 1, 8], strides = [1, 1, 1]} : vector<2x8x8xf32> to vector<2x1x8xf32>
    %256 = vector.broadcast %254 : vector<2x8x1xf32> to vector<2x8x8xf32>
    %257 = vector.broadcast %255 : vector<2x1x8xf32> to vector<2x8x8xf32>
    %258 = arith.mulf %256, %257 : vector<2x8x8xf32>
    %259 = vector.extract_strided_slice %31 {offsets = [0, 0, 2], sizes = [2, 8, 1], strides = [1, 1, 1]} : vector<2x8x8xf32> to vector<2x8x1xf32>
    %260 = vector.extract_strided_slice %62 {offsets = [0, 2, 0], sizes = [2, 1, 8], strides = [1, 1, 1]} : vector<2x8x8xf32> to vector<2x1x8xf32>
    %261 = vector.broadcast %259 : vector<2x8x1xf32> to vector<2x8x8xf32>
    %262 = vector.broadcast %260 : vector<2x1x8xf32> to vector<2x8x8xf32>
    %263 = arith.mulf %261, %262 : vector<2x8x8xf32>
    %264 = vector.extract_strided_slice %31 {offsets = [0, 0, 3], sizes = [2, 8, 1], strides = [1, 1, 1]} : vector<2x8x8xf32> to vector<2x8x1xf32>
    %265 = vector.extract_strided_slice %62 {offsets = [0, 3, 0], sizes = [2, 1, 8], strides = [1, 1, 1]} : vector<2x8x8xf32> to vector<2x1x8xf32>
    %266 = vector.broadcast %264 : vector<2x8x1xf32> to vector<2x8x8xf32>
    %267 = vector.broadcast %265 : vector<2x1x8xf32> to vector<2x8x8xf32>
    %268 = arith.mulf %266, %267 : vector<2x8x8xf32>
    %269 = vector.extract_strided_slice %31 {offsets = [0, 0, 4], sizes = [2, 8, 1], strides = [1, 1, 1]} : vector<2x8x8xf32> to vector<2x8x1xf32>
    %270 = vector.extract_strided_slice %62 {offsets = [0, 4, 0], sizes = [2, 1, 8], strides = [1, 1, 1]} : vector<2x8x8xf32> to vector<2x1x8xf32>
    %271 = vector.broadcast %269 : vector<2x8x1xf32> to vector<2x8x8xf32>
    %272 = vector.broadcast %270 : vector<2x1x8xf32> to vector<2x8x8xf32>
    %273 = arith.mulf %271, %272 : vector<2x8x8xf32>
    %274 = vector.extract_strided_slice %31 {offsets = [0, 0, 5], sizes = [2, 8, 1], strides = [1, 1, 1]} : vector<2x8x8xf32> to vector<2x8x1xf32>
    %275 = vector.extract_strided_slice %62 {offsets = [0, 5, 0], sizes = [2, 1, 8], strides = [1, 1, 1]} : vector<2x8x8xf32> to vector<2x1x8xf32>
    %276 = vector.broadcast %274 : vector<2x8x1xf32> to vector<2x8x8xf32>
    %277 = vector.broadcast %275 : vector<2x1x8xf32> to vector<2x8x8xf32>
    %278 = arith.mulf %276, %277 : vector<2x8x8xf32>
    %279 = vector.extract_strided_slice %31 {offsets = [0, 0, 6], sizes = [2, 8, 1], strides = [1, 1, 1]} : vector<2x8x8xf32> to vector<2x8x1xf32>
    %280 = vector.extract_strided_slice %62 {offsets = [0, 6, 0], sizes = [2, 1, 8], strides = [1, 1, 1]} : vector<2x8x8xf32> to vector<2x1x8xf32>
    %281 = vector.broadcast %279 : vector<2x8x1xf32> to vector<2x8x8xf32>
    %282 = vector.broadcast %280 : vector<2x1x8xf32> to vector<2x8x8xf32>
    %283 = arith.mulf %281, %282 : vector<2x8x8xf32>
    %284 = vector.extract_strided_slice %31 {offsets = [0, 0, 7], sizes = [2, 8, 1], strides = [1, 1, 1]} : vector<2x8x8xf32> to vector<2x8x1xf32>
    %285 = vector.extract_strided_slice %62 {offsets = [0, 7, 0], sizes = [2, 1, 8], strides = [1, 1, 1]} : vector<2x8x8xf32> to vector<2x1x8xf32>
    %286 = vector.broadcast %284 : vector<2x8x1xf32> to vector<2x8x8xf32>
    %287 = vector.broadcast %285 : vector<2x1x8xf32> to vector<2x8x8xf32>
    %288 = arith.mulf %286, %287 : vector<2x8x8xf32>
    %289 = arith.addf %253, %258 : vector<2x8x8xf32>
    %290 = arith.addf %263, %268 : vector<2x8x8xf32>
    %291 = arith.addf %273, %278 : vector<2x8x8xf32>
    %292 = arith.addf %283, %288 : vector<2x8x8xf32>
    %293 = arith.addf %289, %290 : vector<2x8x8xf32>
    %294 = arith.addf %291, %292 : vector<2x8x8xf32>
    %295 = arith.addf %293, %294 : vector<2x8x8xf32>
    %296 = vector.extract_strided_slice %93 {offsets = [0, 0, 0], sizes = [2, 8, 1], strides = [1, 1, 1]} : vector<2x8x8xf32> to vector<2x8x1xf32>
    %297 = vector.extract_strided_slice %124 {offsets = [0, 0, 0], sizes = [2, 1, 8], strides = [1, 1, 1]} : vector<2x8x8xf32> to vector<2x1x8xf32>
    %298 = vector.broadcast %296 : vector<2x8x1xf32> to vector<2x8x8xf32>
    %299 = vector.broadcast %297 : vector<2x1x8xf32> to vector<2x8x8xf32>
    %300 = arith.mulf %298, %299 : vector<2x8x8xf32>
    %301 = vector.extract_strided_slice %93 {offsets = [0, 0, 1], sizes = [2, 8, 1], strides = [1, 1, 1]} : vector<2x8x8xf32> to vector<2x8x1xf32>
    %302 = vector.extract_strided_slice %124 {offsets = [0, 1, 0], sizes = [2, 1, 8], strides = [1, 1, 1]} : vector<2x8x8xf32> to vector<2x1x8xf32>
    %303 = vector.broadcast %301 : vector<2x8x1xf32> to vector<2x8x8xf32>
    %304 = vector.broadcast %302 : vector<2x1x8xf32> to vector<2x8x8xf32>
    %305 = arith.mulf %303, %304 : vector<2x8x8xf32>
    %306 = vector.extract_strided_slice %93 {offsets = [0, 0, 2], sizes = [2, 8, 1], strides = [1, 1, 1]} : vector<2x8x8xf32> to vector<2x8x1xf32>
    %307 = vector.extract_strided_slice %124 {offsets = [0, 2, 0], sizes = [2, 1, 8], strides = [1, 1, 1]} : vector<2x8x8xf32> to vector<2x1x8xf32>
    %308 = vector.broadcast %306 : vector<2x8x1xf32> to vector<2x8x8xf32>
    %309 = vector.broadcast %307 : vector<2x1x8xf32> to vector<2x8x8xf32>
    %310 = arith.mulf %308, %309 : vector<2x8x8xf32>
    %311 = vector.extract_strided_slice %93 {offsets = [0, 0, 3], sizes = [2, 8, 1], strides = [1, 1, 1]} : vector<2x8x8xf32> to vector<2x8x1xf32>
    %312 = vector.extract_strided_slice %124 {offsets = [0, 3, 0], sizes = [2, 1, 8], strides = [1, 1, 1]} : vector<2x8x8xf32> to vector<2x1x8xf32>
    %313 = vector.broadcast %311 : vector<2x8x1xf32> to vector<2x8x8xf32>
    %314 = vector.broadcast %312 : vector<2x1x8xf32> to vector<2x8x8xf32>
    %315 = arith.mulf %313, %314 : vector<2x8x8xf32>
    %316 = vector.extract_strided_slice %93 {offsets = [0, 0, 4], sizes = [2, 8, 1], strides = [1, 1, 1]} : vector<2x8x8xf32> to vector<2x8x1xf32>
    %317 = vector.extract_strided_slice %124 {offsets = [0, 4, 0], sizes = [2, 1, 8], strides = [1, 1, 1]} : vector<2x8x8xf32> to vector<2x1x8xf32>
    %318 = vector.broadcast %316 : vector<2x8x1xf32> to vector<2x8x8xf32>
    %319 = vector.broadcast %317 : vector<2x1x8xf32> to vector<2x8x8xf32>
    %320 = arith.mulf %318, %319 : vector<2x8x8xf32>
    %321 = vector.extract_strided_slice %93 {offsets = [0, 0, 5], sizes = [2, 8, 1], strides = [1, 1, 1]} : vector<2x8x8xf32> to vector<2x8x1xf32>
    %322 = vector.extract_strided_slice %124 {offsets = [0, 5, 0], sizes = [2, 1, 8], strides = [1, 1, 1]} : vector<2x8x8xf32> to vector<2x1x8xf32>
    %323 = vector.broadcast %321 : vector<2x8x1xf32> to vector<2x8x8xf32>
    %324 = vector.broadcast %322 : vector<2x1x8xf32> to vector<2x8x8xf32>
    %325 = arith.mulf %323, %324 : vector<2x8x8xf32>
    %326 = vector.extract_strided_slice %93 {offsets = [0, 0, 6], sizes = [2, 8, 1], strides = [1, 1, 1]} : vector<2x8x8xf32> to vector<2x8x1xf32>
    %327 = vector.extract_strided_slice %124 {offsets = [0, 6, 0], sizes = [2, 1, 8], strides = [1, 1, 1]} : vector<2x8x8xf32> to vector<2x1x8xf32>
    %328 = vector.broadcast %326 : vector<2x8x1xf32> to vector<2x8x8xf32>
    %329 = vector.broadcast %327 : vector<2x1x8xf32> to vector<2x8x8xf32>
    %330 = arith.mulf %328, %329 : vector<2x8x8xf32>
    %331 = vector.extract_strided_slice %93 {offsets = [0, 0, 7], sizes = [2, 8, 1], strides = [1, 1, 1]} : vector<2x8x8xf32> to vector<2x8x1xf32>
    %332 = vector.extract_strided_slice %124 {offsets = [0, 7, 0], sizes = [2, 1, 8], strides = [1, 1, 1]} : vector<2x8x8xf32> to vector<2x1x8xf32>
    %333 = vector.broadcast %331 : vector<2x8x1xf32> to vector<2x8x8xf32>
    %334 = vector.broadcast %332 : vector<2x1x8xf32> to vector<2x8x8xf32>
    %335 = arith.mulf %333, %334 : vector<2x8x8xf32>
    %336 = arith.addf %300, %305 : vector<2x8x8xf32>
    %337 = arith.addf %310, %315 : vector<2x8x8xf32>
    %338 = arith.addf %320, %325 : vector<2x8x8xf32>
    %339 = arith.addf %330, %335 : vector<2x8x8xf32>
    %340 = arith.addf %336, %337 : vector<2x8x8xf32>
    %341 = arith.addf %338, %339 : vector<2x8x8xf32>
    %342 = arith.addf %340, %341 : vector<2x8x8xf32>
    %343 = vector.extract_strided_slice %155 {offsets = [0, 0, 0], sizes = [2, 8, 1], strides = [1, 1, 1]} : vector<2x8x8xf32> to vector<2x8x1xf32>
    %344 = vector.extract_strided_slice %186 {offsets = [0, 0, 0], sizes = [2, 1, 8], strides = [1, 1, 1]} : vector<2x8x8xf32> to vector<2x1x8xf32>
    %345 = vector.broadcast %343 : vector<2x8x1xf32> to vector<2x8x8xf32>
    %346 = vector.broadcast %344 : vector<2x1x8xf32> to vector<2x8x8xf32>
    %347 = arith.mulf %345, %346 : vector<2x8x8xf32>
    %348 = vector.extract_strided_slice %155 {offsets = [0, 0, 1], sizes = [2, 8, 1], strides = [1, 1, 1]} : vector<2x8x8xf32> to vector<2x8x1xf32>
    %349 = vector.extract_strided_slice %186 {offsets = [0, 1, 0], sizes = [2, 1, 8], strides = [1, 1, 1]} : vector<2x8x8xf32> to vector<2x1x8xf32>
    %350 = vector.broadcast %348 : vector<2x8x1xf32> to vector<2x8x8xf32>
    %351 = vector.broadcast %349 : vector<2x1x8xf32> to vector<2x8x8xf32>
    %352 = arith.mulf %350, %351 : vector<2x8x8xf32>
    %353 = vector.extract_strided_slice %155 {offsets = [0, 0, 2], sizes = [2, 8, 1], strides = [1, 1, 1]} : vector<2x8x8xf32> to vector<2x8x1xf32>
    %354 = vector.extract_strided_slice %186 {offsets = [0, 2, 0], sizes = [2, 1, 8], strides = [1, 1, 1]} : vector<2x8x8xf32> to vector<2x1x8xf32>
    %355 = vector.broadcast %353 : vector<2x8x1xf32> to vector<2x8x8xf32>
    %356 = vector.broadcast %354 : vector<2x1x8xf32> to vector<2x8x8xf32>
    %357 = arith.mulf %355, %356 : vector<2x8x8xf32>
    %358 = vector.extract_strided_slice %155 {offsets = [0, 0, 3], sizes = [2, 8, 1], strides = [1, 1, 1]} : vector<2x8x8xf32> to vector<2x8x1xf32>
    %359 = vector.extract_strided_slice %186 {offsets = [0, 3, 0], sizes = [2, 1, 8], strides = [1, 1, 1]} : vector<2x8x8xf32> to vector<2x1x8xf32>
    %360 = vector.broadcast %358 : vector<2x8x1xf32> to vector<2x8x8xf32>
    %361 = vector.broadcast %359 : vector<2x1x8xf32> to vector<2x8x8xf32>
    %362 = arith.mulf %360, %361 : vector<2x8x8xf32>
    %363 = vector.extract_strided_slice %155 {offsets = [0, 0, 4], sizes = [2, 8, 1], strides = [1, 1, 1]} : vector<2x8x8xf32> to vector<2x8x1xf32>
    %364 = vector.extract_strided_slice %186 {offsets = [0, 4, 0], sizes = [2, 1, 8], strides = [1, 1, 1]} : vector<2x8x8xf32> to vector<2x1x8xf32>
    %365 = vector.broadcast %363 : vector<2x8x1xf32> to vector<2x8x8xf32>
    %366 = vector.broadcast %364 : vector<2x1x8xf32> to vector<2x8x8xf32>
    %367 = arith.mulf %365, %366 : vector<2x8x8xf32>
    %368 = vector.extract_strided_slice %155 {offsets = [0, 0, 5], sizes = [2, 8, 1], strides = [1, 1, 1]} : vector<2x8x8xf32> to vector<2x8x1xf32>
    %369 = vector.extract_strided_slice %186 {offsets = [0, 5, 0], sizes = [2, 1, 8], strides = [1, 1, 1]} : vector<2x8x8xf32> to vector<2x1x8xf32>
    %370 = vector.broadcast %368 : vector<2x8x1xf32> to vector<2x8x8xf32>
    %371 = vector.broadcast %369 : vector<2x1x8xf32> to vector<2x8x8xf32>
    %372 = arith.mulf %370, %371 : vector<2x8x8xf32>
    %373 = vector.extract_strided_slice %155 {offsets = [0, 0, 6], sizes = [2, 8, 1], strides = [1, 1, 1]} : vector<2x8x8xf32> to vector<2x8x1xf32>
    %374 = vector.extract_strided_slice %186 {offsets = [0, 6, 0], sizes = [2, 1, 8], strides = [1, 1, 1]} : vector<2x8x8xf32> to vector<2x1x8xf32>
    %375 = vector.broadcast %373 : vector<2x8x1xf32> to vector<2x8x8xf32>
    %376 = vector.broadcast %374 : vector<2x1x8xf32> to vector<2x8x8xf32>
    %377 = arith.mulf %375, %376 : vector<2x8x8xf32>
    %378 = vector.extract_strided_slice %155 {offsets = [0, 0, 7], sizes = [2, 8, 1], strides = [1, 1, 1]} : vector<2x8x8xf32> to vector<2x8x1xf32>
    %379 = vector.extract_strided_slice %186 {offsets = [0, 7, 0], sizes = [2, 1, 8], strides = [1, 1, 1]} : vector<2x8x8xf32> to vector<2x1x8xf32>
    %380 = vector.broadcast %378 : vector<2x8x1xf32> to vector<2x8x8xf32>
    %381 = vector.broadcast %379 : vector<2x1x8xf32> to vector<2x8x8xf32>
    %382 = arith.mulf %380, %381 : vector<2x8x8xf32>
    %383 = arith.addf %347, %352 : vector<2x8x8xf32>
    %384 = arith.addf %357, %362 : vector<2x8x8xf32>
    %385 = arith.addf %367, %372 : vector<2x8x8xf32>
    %386 = arith.addf %377, %382 : vector<2x8x8xf32>
    %387 = arith.addf %383, %384 : vector<2x8x8xf32>
    %388 = arith.addf %385, %386 : vector<2x8x8xf32>
    %389 = arith.addf %387, %388 : vector<2x8x8xf32>
    %390 = vector.extract_strided_slice %217 {offsets = [0, 0, 0], sizes = [2, 8, 1], strides = [1, 1, 1]} : vector<2x8x8xf32> to vector<2x8x1xf32>
    %391 = vector.extract_strided_slice %248 {offsets = [0, 0, 0], sizes = [2, 1, 8], strides = [1, 1, 1]} : vector<2x8x8xf32> to vector<2x1x8xf32>
    %392 = vector.broadcast %390 : vector<2x8x1xf32> to vector<2x8x8xf32>
    %393 = vector.broadcast %391 : vector<2x1x8xf32> to vector<2x8x8xf32>
    %394 = arith.mulf %392, %393 : vector<2x8x8xf32>
    %395 = vector.extract_strided_slice %217 {offsets = [0, 0, 1], sizes = [2, 8, 1], strides = [1, 1, 1]} : vector<2x8x8xf32> to vector<2x8x1xf32>
    %396 = vector.extract_strided_slice %248 {offsets = [0, 1, 0], sizes = [2, 1, 8], strides = [1, 1, 1]} : vector<2x8x8xf32> to vector<2x1x8xf32>
    %397 = vector.broadcast %395 : vector<2x8x1xf32> to vector<2x8x8xf32>
    %398 = vector.broadcast %396 : vector<2x1x8xf32> to vector<2x8x8xf32>
    %399 = arith.mulf %397, %398 : vector<2x8x8xf32>
    %400 = vector.extract_strided_slice %217 {offsets = [0, 0, 2], sizes = [2, 8, 1], strides = [1, 1, 1]} : vector<2x8x8xf32> to vector<2x8x1xf32>
    %401 = vector.extract_strided_slice %248 {offsets = [0, 2, 0], sizes = [2, 1, 8], strides = [1, 1, 1]} : vector<2x8x8xf32> to vector<2x1x8xf32>
    %402 = vector.broadcast %400 : vector<2x8x1xf32> to vector<2x8x8xf32>
    %403 = vector.broadcast %401 : vector<2x1x8xf32> to vector<2x8x8xf32>
    %404 = arith.mulf %402, %403 : vector<2x8x8xf32>
    %405 = vector.extract_strided_slice %217 {offsets = [0, 0, 3], sizes = [2, 8, 1], strides = [1, 1, 1]} : vector<2x8x8xf32> to vector<2x8x1xf32>
    %406 = vector.extract_strided_slice %248 {offsets = [0, 3, 0], sizes = [2, 1, 8], strides = [1, 1, 1]} : vector<2x8x8xf32> to vector<2x1x8xf32>
    %407 = vector.broadcast %405 : vector<2x8x1xf32> to vector<2x8x8xf32>
    %408 = vector.broadcast %406 : vector<2x1x8xf32> to vector<2x8x8xf32>
    %409 = arith.mulf %407, %408 : vector<2x8x8xf32>
    %410 = vector.extract_strided_slice %217 {offsets = [0, 0, 4], sizes = [2, 8, 1], strides = [1, 1, 1]} : vector<2x8x8xf32> to vector<2x8x1xf32>
    %411 = vector.extract_strided_slice %248 {offsets = [0, 4, 0], sizes = [2, 1, 8], strides = [1, 1, 1]} : vector<2x8x8xf32> to vector<2x1x8xf32>
    %412 = vector.broadcast %410 : vector<2x8x1xf32> to vector<2x8x8xf32>
    %413 = vector.broadcast %411 : vector<2x1x8xf32> to vector<2x8x8xf32>
    %414 = arith.mulf %412, %413 : vector<2x8x8xf32>
    %415 = vector.extract_strided_slice %217 {offsets = [0, 0, 5], sizes = [2, 8, 1], strides = [1, 1, 1]} : vector<2x8x8xf32> to vector<2x8x1xf32>
    %416 = vector.extract_strided_slice %248 {offsets = [0, 5, 0], sizes = [2, 1, 8], strides = [1, 1, 1]} : vector<2x8x8xf32> to vector<2x1x8xf32>
    %417 = vector.broadcast %415 : vector<2x8x1xf32> to vector<2x8x8xf32>
    %418 = vector.broadcast %416 : vector<2x1x8xf32> to vector<2x8x8xf32>
    %419 = arith.mulf %417, %418 : vector<2x8x8xf32>
    %420 = vector.extract_strided_slice %217 {offsets = [0, 0, 6], sizes = [2, 8, 1], strides = [1, 1, 1]} : vector<2x8x8xf32> to vector<2x8x1xf32>
    %421 = vector.extract_strided_slice %248 {offsets = [0, 6, 0], sizes = [2, 1, 8], strides = [1, 1, 1]} : vector<2x8x8xf32> to vector<2x1x8xf32>
    %422 = vector.broadcast %420 : vector<2x8x1xf32> to vector<2x8x8xf32>
    %423 = vector.broadcast %421 : vector<2x1x8xf32> to vector<2x8x8xf32>
    %424 = arith.mulf %422, %423 : vector<2x8x8xf32>
    %425 = vector.extract_strided_slice %217 {offsets = [0, 0, 7], sizes = [2, 8, 1], strides = [1, 1, 1]} : vector<2x8x8xf32> to vector<2x8x1xf32>
    %426 = vector.extract_strided_slice %248 {offsets = [0, 7, 0], sizes = [2, 1, 8], strides = [1, 1, 1]} : vector<2x8x8xf32> to vector<2x1x8xf32>
    %427 = vector.broadcast %425 : vector<2x8x1xf32> to vector<2x8x8xf32>
    %428 = vector.broadcast %426 : vector<2x1x8xf32> to vector<2x8x8xf32>
    %429 = arith.mulf %427, %428 : vector<2x8x8xf32>
    %430 = arith.addf %394, %399 : vector<2x8x8xf32>
    %431 = arith.addf %404, %409 : vector<2x8x8xf32>
    %432 = arith.addf %414, %419 : vector<2x8x8xf32>
    %433 = arith.addf %424, %429 : vector<2x8x8xf32>
    %434 = arith.addf %430, %431 : vector<2x8x8xf32>
    %435 = arith.addf %432, %433 : vector<2x8x8xf32>
    %436 = arith.addf %434, %435 : vector<2x8x8xf32>
    %437 = vector.extract_strided_slice %295 {offsets = [0, 0, 0], sizes = [2, 8, 1], strides = [1, 1, 1]} : vector<2x8x8xf32> to vector<2x8x1xf32>
    %438 = vector.extract_strided_slice %342 {offsets = [0, 0, 0], sizes = [2, 1, 8], strides = [1, 1, 1]} : vector<2x8x8xf32> to vector<2x1x8xf32>
    %439 = vector.broadcast %437 : vector<2x8x1xf32> to vector<2x8x8xf32>
    %440 = vector.broadcast %438 : vector<2x1x8xf32> to vector<2x8x8xf32>
    %441 = arith.mulf %439, %440 : vector<2x8x8xf32>
    %442 = vector.extract_strided_slice %295 {offsets = [0, 0, 1], sizes = [2, 8, 1], strides = [1, 1, 1]} : vector<2x8x8xf32> to vector<2x8x1xf32>
    %443 = vector.extract_strided_slice %342 {offsets = [0, 1, 0], sizes = [2, 1, 8], strides = [1, 1, 1]} : vector<2x8x8xf32> to vector<2x1x8xf32>
    %444 = vector.broadcast %442 : vector<2x8x1xf32> to vector<2x8x8xf32>
    %445 = vector.broadcast %443 : vector<2x1x8xf32> to vector<2x8x8xf32>
    %446 = arith.mulf %444, %445 : vector<2x8x8xf32>
    %447 = vector.extract_strided_slice %295 {offsets = [0, 0, 2], sizes = [2, 8, 1], strides = [1, 1, 1]} : vector<2x8x8xf32> to vector<2x8x1xf32>
    %448 = vector.extract_strided_slice %342 {offsets = [0, 2, 0], sizes = [2, 1, 8], strides = [1, 1, 1]} : vector<2x8x8xf32> to vector<2x1x8xf32>
    %449 = vector.broadcast %447 : vector<2x8x1xf32> to vector<2x8x8xf32>
    %450 = vector.broadcast %448 : vector<2x1x8xf32> to vector<2x8x8xf32>
    %451 = arith.mulf %449, %450 : vector<2x8x8xf32>
    %452 = vector.extract_strided_slice %295 {offsets = [0, 0, 3], sizes = [2, 8, 1], strides = [1, 1, 1]} : vector<2x8x8xf32> to vector<2x8x1xf32>
    %453 = vector.extract_strided_slice %342 {offsets = [0, 3, 0], sizes = [2, 1, 8], strides = [1, 1, 1]} : vector<2x8x8xf32> to vector<2x1x8xf32>
    %454 = vector.broadcast %452 : vector<2x8x1xf32> to vector<2x8x8xf32>
    %455 = vector.broadcast %453 : vector<2x1x8xf32> to vector<2x8x8xf32>
    %456 = arith.mulf %454, %455 : vector<2x8x8xf32>
    %457 = vector.extract_strided_slice %295 {offsets = [0, 0, 4], sizes = [2, 8, 1], strides = [1, 1, 1]} : vector<2x8x8xf32> to vector<2x8x1xf32>
    %458 = vector.extract_strided_slice %342 {offsets = [0, 4, 0], sizes = [2, 1, 8], strides = [1, 1, 1]} : vector<2x8x8xf32> to vector<2x1x8xf32>
    %459 = vector.broadcast %457 : vector<2x8x1xf32> to vector<2x8x8xf32>
    %460 = vector.broadcast %458 : vector<2x1x8xf32> to vector<2x8x8xf32>
    %461 = arith.mulf %459, %460 : vector<2x8x8xf32>
    %462 = vector.extract_strided_slice %295 {offsets = [0, 0, 5], sizes = [2, 8, 1], strides = [1, 1, 1]} : vector<2x8x8xf32> to vector<2x8x1xf32>
    %463 = vector.extract_strided_slice %342 {offsets = [0, 5, 0], sizes = [2, 1, 8], strides = [1, 1, 1]} : vector<2x8x8xf32> to vector<2x1x8xf32>
    %464 = vector.broadcast %462 : vector<2x8x1xf32> to vector<2x8x8xf32>
    %465 = vector.broadcast %463 : vector<2x1x8xf32> to vector<2x8x8xf32>
    %466 = arith.mulf %464, %465 : vector<2x8x8xf32>
    %467 = vector.extract_strided_slice %295 {offsets = [0, 0, 6], sizes = [2, 8, 1], strides = [1, 1, 1]} : vector<2x8x8xf32> to vector<2x8x1xf32>
    %468 = vector.extract_strided_slice %342 {offsets = [0, 6, 0], sizes = [2, 1, 8], strides = [1, 1, 1]} : vector<2x8x8xf32> to vector<2x1x8xf32>
    %469 = vector.broadcast %467 : vector<2x8x1xf32> to vector<2x8x8xf32>
    %470 = vector.broadcast %468 : vector<2x1x8xf32> to vector<2x8x8xf32>
    %471 = arith.mulf %469, %470 : vector<2x8x8xf32>
    %472 = vector.extract_strided_slice %295 {offsets = [0, 0, 7], sizes = [2, 8, 1], strides = [1, 1, 1]} : vector<2x8x8xf32> to vector<2x8x1xf32>
    %473 = vector.extract_strided_slice %342 {offsets = [0, 7, 0], sizes = [2, 1, 8], strides = [1, 1, 1]} : vector<2x8x8xf32> to vector<2x1x8xf32>
    %474 = vector.broadcast %472 : vector<2x8x1xf32> to vector<2x8x8xf32>
    %475 = vector.broadcast %473 : vector<2x1x8xf32> to vector<2x8x8xf32>
    %476 = arith.mulf %474, %475 : vector<2x8x8xf32>
    %477 = arith.addf %441, %446 : vector<2x8x8xf32>
    %478 = arith.addf %451, %456 : vector<2x8x8xf32>
    %479 = arith.addf %461, %466 : vector<2x8x8xf32>
    %480 = arith.addf %471, %476 : vector<2x8x8xf32>
    %481 = arith.addf %477, %478 : vector<2x8x8xf32>
    %482 = arith.addf %479, %480 : vector<2x8x8xf32>
    %483 = arith.addf %481, %482 : vector<2x8x8xf32>
    %484 = vector.extract_strided_slice %389 {offsets = [0, 0, 0], sizes = [2, 8, 1], strides = [1, 1, 1]} : vector<2x8x8xf32> to vector<2x8x1xf32>
    %485 = vector.extract_strided_slice %436 {offsets = [0, 0, 0], sizes = [2, 1, 8], strides = [1, 1, 1]} : vector<2x8x8xf32> to vector<2x1x8xf32>
    %486 = vector.broadcast %484 : vector<2x8x1xf32> to vector<2x8x8xf32>
    %487 = vector.broadcast %485 : vector<2x1x8xf32> to vector<2x8x8xf32>
    %488 = arith.mulf %486, %487 : vector<2x8x8xf32>
    %489 = vector.extract_strided_slice %389 {offsets = [0, 0, 1], sizes = [2, 8, 1], strides = [1, 1, 1]} : vector<2x8x8xf32> to vector<2x8x1xf32>
    %490 = vector.extract_strided_slice %436 {offsets = [0, 1, 0], sizes = [2, 1, 8], strides = [1, 1, 1]} : vector<2x8x8xf32> to vector<2x1x8xf32>
    %491 = vector.broadcast %489 : vector<2x8x1xf32> to vector<2x8x8xf32>
    %492 = vector.broadcast %490 : vector<2x1x8xf32> to vector<2x8x8xf32>
    %493 = arith.mulf %491, %492 : vector<2x8x8xf32>
    %494 = vector.extract_strided_slice %389 {offsets = [0, 0, 2], sizes = [2, 8, 1], strides = [1, 1, 1]} : vector<2x8x8xf32> to vector<2x8x1xf32>
    %495 = vector.extract_strided_slice %436 {offsets = [0, 2, 0], sizes = [2, 1, 8], strides = [1, 1, 1]} : vector<2x8x8xf32> to vector<2x1x8xf32>
    %496 = vector.broadcast %494 : vector<2x8x1xf32> to vector<2x8x8xf32>
    %497 = vector.broadcast %495 : vector<2x1x8xf32> to vector<2x8x8xf32>
    %498 = arith.mulf %496, %497 : vector<2x8x8xf32>
    %499 = vector.extract_strided_slice %389 {offsets = [0, 0, 3], sizes = [2, 8, 1], strides = [1, 1, 1]} : vector<2x8x8xf32> to vector<2x8x1xf32>
    %500 = vector.extract_strided_slice %436 {offsets = [0, 3, 0], sizes = [2, 1, 8], strides = [1, 1, 1]} : vector<2x8x8xf32> to vector<2x1x8xf32>
    %501 = vector.broadcast %499 : vector<2x8x1xf32> to vector<2x8x8xf32>
    %502 = vector.broadcast %500 : vector<2x1x8xf32> to vector<2x8x8xf32>
    %503 = arith.mulf %501, %502 : vector<2x8x8xf32>
    %504 = vector.extract_strided_slice %389 {offsets = [0, 0, 4], sizes = [2, 8, 1], strides = [1, 1, 1]} : vector<2x8x8xf32> to vector<2x8x1xf32>
    %505 = vector.extract_strided_slice %436 {offsets = [0, 4, 0], sizes = [2, 1, 8], strides = [1, 1, 1]} : vector<2x8x8xf32> to vector<2x1x8xf32>
    %506 = vector.broadcast %504 : vector<2x8x1xf32> to vector<2x8x8xf32>
    %507 = vector.broadcast %505 : vector<2x1x8xf32> to vector<2x8x8xf32>
    %508 = arith.mulf %506, %507 : vector<2x8x8xf32>
    %509 = vector.extract_strided_slice %389 {offsets = [0, 0, 5], sizes = [2, 8, 1], strides = [1, 1, 1]} : vector<2x8x8xf32> to vector<2x8x1xf32>
    %510 = vector.extract_strided_slice %436 {offsets = [0, 5, 0], sizes = [2, 1, 8], strides = [1, 1, 1]} : vector<2x8x8xf32> to vector<2x1x8xf32>
    %511 = vector.broadcast %509 : vector<2x8x1xf32> to vector<2x8x8xf32>
    %512 = vector.broadcast %510 : vector<2x1x8xf32> to vector<2x8x8xf32>
    %513 = arith.mulf %511, %512 : vector<2x8x8xf32>
    %514 = vector.extract_strided_slice %389 {offsets = [0, 0, 6], sizes = [2, 8, 1], strides = [1, 1, 1]} : vector<2x8x8xf32> to vector<2x8x1xf32>
    %515 = vector.extract_strided_slice %436 {offsets = [0, 6, 0], sizes = [2, 1, 8], strides = [1, 1, 1]} : vector<2x8x8xf32> to vector<2x1x8xf32>
    %516 = vector.broadcast %514 : vector<2x8x1xf32> to vector<2x8x8xf32>
    %517 = vector.broadcast %515 : vector<2x1x8xf32> to vector<2x8x8xf32>
    %518 = arith.mulf %516, %517 : vector<2x8x8xf32>
    %519 = vector.extract_strided_slice %389 {offsets = [0, 0, 7], sizes = [2, 8, 1], strides = [1, 1, 1]} : vector<2x8x8xf32> to vector<2x8x1xf32>
    %520 = vector.extract_strided_slice %436 {offsets = [0, 7, 0], sizes = [2, 1, 8], strides = [1, 1, 1]} : vector<2x8x8xf32> to vector<2x1x8xf32>
    %521 = vector.broadcast %519 : vector<2x8x1xf32> to vector<2x8x8xf32>
    %522 = vector.broadcast %520 : vector<2x1x8xf32> to vector<2x8x8xf32>
    %523 = arith.mulf %521, %522 : vector<2x8x8xf32>
    %524 = arith.addf %488, %493 : vector<2x8x8xf32>
    %525 = arith.addf %498, %503 : vector<2x8x8xf32>
    %526 = arith.addf %508, %513 : vector<2x8x8xf32>
    %527 = arith.addf %518, %523 : vector<2x8x8xf32>
    %528 = arith.addf %524, %525 : vector<2x8x8xf32>
    %529 = arith.addf %526, %527 : vector<2x8x8xf32>
    %530 = arith.addf %528, %529 : vector<2x8x8xf32>
    %531 = vector.extract_strided_slice %483 {offsets = [0, 0, 0], sizes = [2, 8, 1], strides = [1, 1, 1]} : vector<2x8x8xf32> to vector<2x8x1xf32>
    %532 = vector.extract_strided_slice %530 {offsets = [0, 0, 0], sizes = [2, 1, 8], strides = [1, 1, 1]} : vector<2x8x8xf32> to vector<2x1x8xf32>
    %533 = vector.broadcast %531 : vector<2x8x1xf32> to vector<2x8x8xf32>
    %534 = vector.broadcast %532 : vector<2x1x8xf32> to vector<2x8x8xf32>
    %535 = arith.mulf %533, %534 : vector<2x8x8xf32>
    %536 = vector.extract_strided_slice %483 {offsets = [0, 0, 1], sizes = [2, 8, 1], strides = [1, 1, 1]} : vector<2x8x8xf32> to vector<2x8x1xf32>
    %537 = vector.extract_strided_slice %530 {offsets = [0, 1, 0], sizes = [2, 1, 8], strides = [1, 1, 1]} : vector<2x8x8xf32> to vector<2x1x8xf32>
    %538 = vector.broadcast %536 : vector<2x8x1xf32> to vector<2x8x8xf32>
    %539 = vector.broadcast %537 : vector<2x1x8xf32> to vector<2x8x8xf32>
    %540 = arith.mulf %538, %539 : vector<2x8x8xf32>
    %541 = vector.extract_strided_slice %483 {offsets = [0, 0, 2], sizes = [2, 8, 1], strides = [1, 1, 1]} : vector<2x8x8xf32> to vector<2x8x1xf32>
    %542 = vector.extract_strided_slice %530 {offsets = [0, 2, 0], sizes = [2, 1, 8], strides = [1, 1, 1]} : vector<2x8x8xf32> to vector<2x1x8xf32>
    %543 = vector.broadcast %541 : vector<2x8x1xf32> to vector<2x8x8xf32>
    %544 = vector.broadcast %542 : vector<2x1x8xf32> to vector<2x8x8xf32>
    %545 = arith.mulf %543, %544 : vector<2x8x8xf32>
    %546 = vector.extract_strided_slice %483 {offsets = [0, 0, 3], sizes = [2, 8, 1], strides = [1, 1, 1]} : vector<2x8x8xf32> to vector<2x8x1xf32>
    %547 = vector.extract_strided_slice %530 {offsets = [0, 3, 0], sizes = [2, 1, 8], strides = [1, 1, 1]} : vector<2x8x8xf32> to vector<2x1x8xf32>
    %548 = vector.broadcast %546 : vector<2x8x1xf32> to vector<2x8x8xf32>
    %549 = vector.broadcast %547 : vector<2x1x8xf32> to vector<2x8x8xf32>
    %550 = arith.mulf %548, %549 : vector<2x8x8xf32>
    %551 = vector.extract_strided_slice %483 {offsets = [0, 0, 4], sizes = [2, 8, 1], strides = [1, 1, 1]} : vector<2x8x8xf32> to vector<2x8x1xf32>
    %552 = vector.extract_strided_slice %530 {offsets = [0, 4, 0], sizes = [2, 1, 8], strides = [1, 1, 1]} : vector<2x8x8xf32> to vector<2x1x8xf32>
    %553 = vector.broadcast %551 : vector<2x8x1xf32> to vector<2x8x8xf32>
    %554 = vector.broadcast %552 : vector<2x1x8xf32> to vector<2x8x8xf32>
    %555 = arith.mulf %553, %554 : vector<2x8x8xf32>
    %556 = vector.extract_strided_slice %483 {offsets = [0, 0, 5], sizes = [2, 8, 1], strides = [1, 1, 1]} : vector<2x8x8xf32> to vector<2x8x1xf32>
    %557 = vector.extract_strided_slice %530 {offsets = [0, 5, 0], sizes = [2, 1, 8], strides = [1, 1, 1]} : vector<2x8x8xf32> to vector<2x1x8xf32>
    %558 = vector.broadcast %556 : vector<2x8x1xf32> to vector<2x8x8xf32>
    %559 = vector.broadcast %557 : vector<2x1x8xf32> to vector<2x8x8xf32>
    %560 = arith.mulf %558, %559 : vector<2x8x8xf32>
    %561 = vector.extract_strided_slice %483 {offsets = [0, 0, 6], sizes = [2, 8, 1], strides = [1, 1, 1]} : vector<2x8x8xf32> to vector<2x8x1xf32>
    %562 = vector.extract_strided_slice %530 {offsets = [0, 6, 0], sizes = [2, 1, 8], strides = [1, 1, 1]} : vector<2x8x8xf32> to vector<2x1x8xf32>
    %563 = vector.broadcast %561 : vector<2x8x1xf32> to vector<2x8x8xf32>
    %564 = vector.broadcast %562 : vector<2x1x8xf32> to vector<2x8x8xf32>
    %565 = arith.mulf %563, %564 : vector<2x8x8xf32>
    %566 = vector.extract_strided_slice %483 {offsets = [0, 0, 7], sizes = [2, 8, 1], strides = [1, 1, 1]} : vector<2x8x8xf32> to vector<2x8x1xf32>
    %567 = vector.extract_strided_slice %530 {offsets = [0, 7, 0], sizes = [2, 1, 8], strides = [1, 1, 1]} : vector<2x8x8xf32> to vector<2x1x8xf32>
    %568 = vector.broadcast %566 : vector<2x8x1xf32> to vector<2x8x8xf32>
    %569 = vector.broadcast %567 : vector<2x1x8xf32> to vector<2x8x8xf32>
    %570 = arith.mulf %568, %569 : vector<2x8x8xf32>
    %571 = arith.addf %535, %540 : vector<2x8x8xf32>
    %572 = arith.addf %545, %550 : vector<2x8x8xf32>
    %573 = arith.addf %555, %560 : vector<2x8x8xf32>
    %574 = arith.addf %565, %570 : vector<2x8x8xf32>
    %575 = arith.addf %571, %572 : vector<2x8x8xf32>
    %576 = arith.addf %573, %574 : vector<2x8x8xf32>
    %577 = arith.addf %575, %576 : vector<2x8x8xf32>
    %c0_67 = arith.constant 0 : index
    %c0_68 = arith.constant 0 : index
    %578 = vector.load %arg2[%c0_67, %c0_68] : memref<8x8xf32, #tpu.memory_space<vmem>>, vector<8x8xf32>
    %579 = vector.shape_cast %578 : vector<8x8xf32> to vector<1x8x8xf32>
    %580 = vector.broadcast %579 : vector<1x8x8xf32> to vector<2x8x8xf32>
    %581 = arith.mulf %577, %580 : vector<2x8x8xf32>
    %cst = arith.constant dense<0.000000e+00> : vector<2x8xf32>
    %582 = vector.multi_reduction <add>, %581, %cst [2] : vector<2x8x8xf32> to vector<2x8xf32>
    %cst_69 = arith.constant dense<0.000000e+00> : vector<2xf32>
    %583 = vector.multi_reduction <add>, %582, %cst_69 [1] : vector<2x8xf32> to vector<2xf32>
    %584 = vector.shape_cast %583 : vector<2xf32> to vector<2x1xf32>
    %c0_70 = arith.constant 0 : index
    %c0_71 = arith.constant 0 : index
    %585 = vector.load %arg3[%c0_70, %c0_71] : memref<1x32xf32, #tpu.memory_space<vmem>>, vector<1x32xf32>
    %586 = vector.broadcast %584 : vector<2x1xf32> to vector<2x32xf32>
    %587 = vector.broadcast %585 : vector<1x32xf32> to vector<2x32xf32>
    %588 = arith.mulf %586, %587 : vector<2x32xf32>
    %c0_72 = arith.constant 0 : index
    %c0_73 = arith.constant 0 : index
    %589 = vector.load %arg4[%c0_72, %c0_73] : memref<1x32xf32, #tpu.memory_space<vmem>>, vector<1x32xf32>
    %590 = vector.broadcast %589 : vector<1x32xf32> to vector<2x32xf32>
    %591 = arith.addf %588, %590 : vector<2x32xf32>
    %c0_74 = arith.constant 0 : index
    %c0_75 = arith.constant 0 : index
    %592 = vector.load %arg5[%c0_74, %c0_75] : memref<2x32xf32, #tpu.memory_space<vmem>>, vector<2x32xf32>
    tpu.vector_store %arg5[%c0_74, %c0_75], %591 {strides = array<i32>} : memref<2x32xf32, #tpu.memory_space<vmem>>, vector<2x32xf32>,
    return
  }
}

</mosaic_0001>

<llo_original>
// kernel: tpu_custom_call.1
$region0: #{tpu_custom_call.1}
  #allocation0 [shape = 'u32[]', space=smem, size = 0x4, offset = 0x4, fixed_abs, tag = 'smem constant byte address 0x4 - core index']
  #allocation1 [shape = 'u32[72,128]{1,0:T(1,128)}', space=vmem, size = 0x9000, scoped, tag = 'internal scratch']
  %s0 = inlined_call_operand.vmem [shape: f32[2,8,4], index: 0, kind: input, shape index: {}]
  %s1 = inlined_call_operand.vmem [shape: f32[32,8,8], index: 1, kind: input, shape index: {}]
  %s2 = inlined_call_operand.vmem [shape: f32[8,8], index: 2, kind: input, shape index: {}]
  %s3 = inlined_call_operand.vmem [shape: f32[1,32], index: 3, kind: input, shape index: {}]
  %s4 = inlined_call_operand.vmem [shape: f32[1,32], index: 4, kind: input, shape index: {}]
  %s5 = inlined_call_operand.hbm [shape: f32[2,32], index: 5, kind: output, shape index: {}]
  %s6 = sld [smem:[#allocation0]]
  $region30: #{tpu_custom_call.1} parent=0
    _
  %s8 = ssub.s32 1, %s6
  %s9 = scalar_select 0, %s8, %s6
  $region1: #{tpu_custom_call.1} parent=0
    #allocation2 [shape = 'u8[1024]{0}', space=vmem, size = 0x400, scoped, tag = 'output window, operand 0, single buffered']
    #allocation3 [shape = 's32[1]{0}', space=sflag, size = 0x4, scoped, tag = 'scoped memory for tpu_custom_call.1']
    %10 = vsyncpa [#allocation3], 0
    // Predicated region
    $region2: #{tpu_custom_call.1} parent=1 // pred_check
      _
    $region3: #{tpu_custom_call.1} parent=1 // pred_check_branch
      %12 = sbr.rel (0) target = $region5
    $region4: #{tpu_custom_call.1} parent=1 // pred_region
      _
    $region5: #{tpu_custom_call.1} parent=1 // pred_fallthru
      _
    // Predicated region
    $region6: #{tpu_custom_call.1} parent=1 // pred_check
      _
    $region7: #{tpu_custom_call.1} parent=1 // pred_check_branch
      %14 = sbr.rel (0) target = $region9
    $region8: #{tpu_custom_call.1} parent=1 // pred_region
      _
    $region9: #{tpu_custom_call.1} parent=1 // pred_fallthru
      _
    // Predicated region
    $region10: #{tpu_custom_call.1} parent=1 // pred_check
      _
    $region11: #{tpu_custom_call.1} parent=1 // pred_check_branch
      %16 = sbr.rel (0) target = $region13
    $region12: #{tpu_custom_call.1} parent=1 // pred_region
      _
    $region13: #{tpu_custom_call.1} parent=1 // pred_fallthru
      _
    // Predicated region
    $region14: #{tpu_custom_call.1} parent=1 // pred_check
      _
    $region15: #{tpu_custom_call.1} parent=1 // pred_check_branch
      %18 = sbr.rel (0) target = $region17
    $region16: #{tpu_custom_call.1} parent=1 // pred_region
      _
    $region17: #{tpu_custom_call.1} parent=1 // pred_fallthru
      _
    // Predicated region
    $region18: #{tpu_custom_call.1} parent=1 // pred_check
      _
    $region19: #{tpu_custom_call.1} parent=1 // pred_check_branch
      %20 = sbr.rel (0) target = $region21
    $region20: #{tpu_custom_call.1} parent=1 // pred_region
      _
    $region21: #{tpu_custom_call.1} parent=1 // pred_fallthru
      _
    %v21 = vld [vmem:[%s0] sm:$0xff]
    %v22 = vld [vmem:[%s0 + $0x8] sm:$0xff]
    %v23 = vld [vmem:[%s1] sm:$0xff]
    %s25 = vtos %v21
    %v26 = vstv %s25
    %s29 = vtos %v22
    %v30 = vstv %s29
    %v32 = vmul.f32 %v26, %v23
    %v33 = vmul.f32 %v30, %v23
    %s34 = scalar_lea.vmem %s1, 8
    %v35 = vld [vmem:[%s34] sm:$0xff]
    %36 = vrot.lane.b32.xlu0 %v21, 127
    %v37 = vpop.permute.xlu0 %36
    %38 = vrot.lane.b32.xlu0 %v22, 127
    %v39 = vpop.permute.xlu0 %38
    %s40 = vtos %v37
    %v41 = vstv %s40
    %s43 = vtos %v39
    %v44 = vstv %s43
    %v46 = vmul.f32 %v41, %v35
    %v47 = vmul.f32 %v44, %v35
    %s48 = scalar_lea.vmem %s1, 16
    %v49 = vld [vmem:[%s48] sm:$0xff]
    %50 = vrot.lane.b32.xlu0 %v21, 126
    %v51 = vpop.permute.xlu0 %50
    %52 = vrot.lane.b32.xlu0 %v22, 126
    %v53 = vpop.permute.xlu0 %52
    %s54 = vtos %v51
    %v55 = vstv %s54
    %s57 = vtos %v53
    %v58 = vstv %s57
    %v60 = vmul.f32 %v55, %v49
    %v61 = vmul.f32 %v58, %v49
    %s62 = scalar_lea.vmem %s1, 24
    %v63 = vld [vmem:[%s62] sm:$0xff]
    %64 = vrot.lane.b32.xlu0 %v21, 125
    %v65 = vpop.permute.xlu0 %64
    %66 = vrot.lane.b32.xlu0 %v22, 125
    %v67 = vpop.permute.xlu0 %66
    %s68 = vtos %v65
    %v69 = vstv %s68
    %s71 = vtos %v67
    %v72 = vstv %s71
    %v74 = vmul.f32 %v69, %v63
    %v75 = vmul.f32 %v72, %v63
    %v76 = vadd.f32 %v32, %v46
    %v77 = vadd.f32 %v33, %v47
    %v78 = vadd.f32 %v60, %v74
    %v79 = vadd.f32 %v61, %v75
    %v80 = vadd.f32 %v76, %v78
    %v81 = vadd.f32 %v77, %v79
    %s82 = scalar_lea.vmem %s1, 32
    %v83 = vld [vmem:[%s82] sm:$0xff]
    %v84 = vrot.slane %v21, 1
    %v85 = vrot.slane %v22, 1
    %s86 = vtos %v84
    %v87 = vstv %s86
    %s89 = vtos %v85
    %v90 = vstv %s89
    %v92 = vmul.f32 %v87, %v83
    %v93 = vmul.f32 %v90, %v83
    %s94 = scalar_lea.vmem %s1, 40
    %v95 = vld [vmem:[%s94] sm:$0xff]
    %96 = vrot.lane.b32.xlu0 %v84, 127
    %v97 = vpop.permute.xlu0 %96
    %98 = vrot.lane.b32.xlu0 %v85, 127
    %v99 = vpop.permute.xlu0 %98
    %s100 = vtos %v97
    %v101 = vstv %s100
    %s103 = vtos %v99
    %v104 = vstv %s103
    %v106 = vmul.f32 %v101, %v95
    %v107 = vmul.f32 %v104, %v95
    %s108 = scalar_lea.vmem %s1, 48
    %v109 = vld [vmem:[%s108] sm:$0xff]
    %110 = vrot.lane.b32.xlu0 %v84, 126
    %v111 = vpop.permute.xlu0 %110
    %112 = vrot.lane.b32.xlu0 %v85, 126
    %v113 = vpop.permute.xlu0 %112
    %s114 = vtos %v111
    %v115 = vstv %s114
    %s117 = vtos %v113
    %v118 = vstv %s117
    %v120 = vmul.f32 %v115, %v109
    %v121 = vmul.f32 %v118, %v109
    %s122 = scalar_lea.vmem %s1, 56
    %v123 = vld [vmem:[%s122] sm:$0xff]
    %124 = vrot.lane.b32.xlu0 %v84, 125
    %v125 = vpop.permute.xlu0 %124
    %126 = vrot.lane.b32.xlu0 %v85, 125
    %v127 = vpop.permute.xlu0 %126
    %s128 = vtos %v125
    %v129 = vstv %s128
    %s131 = vtos %v127
    %v132 = vstv %s131
    %v134 = vmul.f32 %v129, %v123
    %v135 = vmul.f32 %v132, %v123
    %v136 = vadd.f32 %v92, %v106
    %v137 = vadd.f32 %v93, %v107
    %v138 = vadd.f32 %v120, %v134
    %v139 = vadd.f32 %v121, %v135
    %v140 = vadd.f32 %v136, %v138
    %v141 = vadd.f32 %v137, %v139
    %s142 = scalar_lea.vmem %s1, 64
    %v143 = vld [vmem:[%s142] sm:$0xff]
    %v144 = vrot.slane %v21, 2
    %v145 = vrot.slane %v22, 2
    %s146 = vtos %v144
    %v147 = vstv %s146
    %s149 = vtos %v145
    %v150 = vstv %s149
    %v152 = vmul.f32 %v147, %v143
    %v153 = vmul.f32 %v150, %v143
    %s154 = scalar_lea.vmem %s1, 72
    %v155 = vld [vmem:[%s154] sm:$0xff]
    %156 = vrot.lane.b32.xlu0 %v144, 127
    %v157 = vpop.permute.xlu0 %156
    %158 = vrot.lane.b32.xlu0 %v145, 127
    %v159 = vpop.permute.xlu0 %158
    %s160 = vtos %v157
    %v161 = vstv %s160
    %s163 = vtos %v159
    %v164 = vstv %s163
    %v166 = vmul.f32 %v161, %v155
    %v167 = vmul.f32 %v164, %v155
    %s168 = scalar_lea.vmem %s1, 80
    %v169 = vld [vmem:[%s168] sm:$0xff]
    %170 = vrot.lane.b32.xlu0 %v144, 126
    %v171 = vpop.permute.xlu0 %170
    %172 = vrot.lane.b32.xlu0 %v145, 126
    %v173 = vpop.permute.xlu0 %172
    %s174 = vtos %v171
    %v175 = vstv %s174
    %s177 = vtos %v173
    %v178 = vstv %s177
    %v180 = vmul.f32 %v175, %v169
    %v181 = vmul.f32 %v178, %v169
    %s182 = scalar_lea.vmem %s1, 88
    %v183 = vld [vmem:[%s182] sm:$0xff]
    %184 = vrot.lane.b32.xlu0 %v144, 125
    %v185 = vpop.permute.xlu0 %184
    %186 = vrot.lane.b32.xlu0 %v145, 125
    %v187 = vpop.permute.xlu0 %186
    %s188 = vtos %v185
    %v189 = vstv %s188
    %s191 = vtos %v187
    %v192 = vstv %s191
    %v194 = vmul.f32 %v189, %v183
    %v195 = vmul.f32 %v192, %v183
    %v196 = vadd.f32 %v152, %v166
    %v197 = vadd.f32 %v153, %v167
    %v198 = vadd.f32 %v180, %v194
    %v199 = vadd.f32 %v181, %v195
    %v200 = vadd.f32 %v196, %v198
    %v201 = vadd.f32 %v197, %v199
    %s202 = scalar_lea.vmem %s1, 96
    %v203 = vld [vmem:[%s202] sm:$0xff]
    %v204 = vrot.slane %v21, 3
    %v205 = vrot.slane %v22, 3
    %s206 = vtos %v204
    %v207 = vstv %s206
    %s209 = vtos %v205
    %v210 = vstv %s209
    %v212 = vmul.f32 %v207, %v203
    %v213 = vmul.f32 %v210, %v203
    %s214 = scalar_lea.vmem %s1, 104
    %v215 = vld [vmem:[%s214] sm:$0xff]
    %216 = vrot.lane.b32.xlu0 %v204, 127
    %v217 = vpop.permute.xlu0 %216
    %218 = vrot.lane.b32.xlu0 %v205, 127
    %v219 = vpop.permute.xlu0 %218
    %s220 = vtos %v217
    %v221 = vstv %s220
    %s223 = vtos %v219
    %v224 = vstv %s223
    %v226 = vmul.f32 %v221, %v215
    %v227 = vmul.f32 %v224, %v215
    %s228 = scalar_lea.vmem %s1, 112
    %v229 = vld [vmem:[%s228] sm:$0xff]
    %230 = vrot.lane.b32.xlu0 %v204, 126
    %v231 = vpop.permute.xlu0 %230
    %232 = vrot.lane.b32.xlu0 %v205, 126
    %v233 = vpop.permute.xlu0 %232
    %s234 = vtos %v231
    %v235 = vstv %s234
    %s237 = vtos %v233
    %v238 = vstv %s237
    %v240 = vmul.f32 %v235, %v229
    %v241 = vmul.f32 %v238, %v229
    %s242 = scalar_lea.vmem %s1, 120
    %v243 = vld [vmem:[%s242] sm:$0xff]
    %244 = vrot.lane.b32.xlu0 %v204, 125
    %v245 = vpop.permute.xlu0 %244
    %246 = vrot.lane.b32.xlu0 %v205, 125
    %v247 = vpop.permute.xlu0 %246
    %s248 = vtos %v245
    %v249 = vstv %s248
    %s251 = vtos %v247
    %v252 = vstv %s251
    %v254 = vmul.f32 %v249, %v243
    %v255 = vmul.f32 %v252, %v243
    %v256 = vadd.f32 %v212, %v226
    %v257 = vadd.f32 %v213, %v227
    %v258 = vadd.f32 %v240, %v254
    %v259 = vadd.f32 %v241, %v255
    %v260 = vadd.f32 %v256, %v258
    %v261 = vadd.f32 %v257, %v259
    %s262 = scalar_lea.vmem %s1, 128
    %v263 = vld [vmem:[%s262] sm:$0xff]
    %v264 = vrot.slane %v21, 4
    %v265 = vrot.slane %v22, 4
    %s266 = vtos %v264
    %v267 = vstv %s266
    %s269 = vtos %v265
    %v270 = vstv %s269
    %v272 = vmul.f32 %v267, %v263
    %v273 = vmul.f32 %v270, %v263
    %s274 = scalar_lea.vmem %s1, 136
    %v275 = vld [vmem:[%s274] sm:$0xff]
    %276 = vrot.lane.b32.xlu0 %v264, 127
    %v277 = vpop.permute.xlu0 %276
    %278 = vrot.lane.b32.xlu0 %v265, 127
    %v279 = vpop.permute.xlu0 %278
    %s280 = vtos %v277
    %v281 = vstv %s280
    %s283 = vtos %v279
    %v284 = vstv %s283
    %v286 = vmul.f32 %v281, %v275
    %v287 = vmul.f32 %v284, %v275
    %s288 = scalar_lea.vmem %s1, 144
    %v289 = vld [vmem:[%s288] sm:$0xff]
    %290 = vrot.lane.b32.xlu0 %v264, 126
    %v291 = vpop.permute.xlu0 %290
    %292 = vrot.lane.b32.xlu0 %v265, 126
    %v293 = vpop.permute.xlu0 %292
    %s294 = vtos %v291
    %v295 = vstv %s294
    %s297 = vtos %v293
    %v298 = vstv %s297
    %v300 = vmul.f32 %v295, %v289
    %v301 = vmul.f32 %v298, %v289
    %s302 = scalar_lea.vmem %s1, 152
    %v303 = vld [vmem:[%s302] sm:$0xff]
    %304 = vrot.lane.b32.xlu0 %v264, 125
    %v305 = vpop.permute.xlu0 %304
    %306 = vrot.lane.b32.xlu0 %v265, 125
    %v307 = vpop.permute.xlu0 %306
    %s308 = vtos %v305
    %v309 = vstv %s308
    %s311 = vtos %v307
    %v312 = vstv %s311
    %v314 = vmul.f32 %v309, %v303
    %v315 = vmul.f32 %v312, %v303
    %v316 = vadd.f32 %v272, %v286
    %v317 = vadd.f32 %v273, %v287
    %v318 = vadd.f32 %v300, %v314
    %v319 = vadd.f32 %v301, %v315
    %v320 = vadd.f32 %v316, %v318
    %v321 = vadd.f32 %v317, %v319
    %s322 = scalar_lea.vmem %s1, 160
    %v323 = vld [vmem:[%s322] sm:$0xff]
    %v324 = vrot.slane %v21, 5
    %v325 = vrot.slane %v22, 5
    %s326 = vtos %v324
    %v327 = vstv %s326
    %s329 = vtos %v325
    %v330 = vstv %s329
    %v332 = vmul.f32 %v327, %v323
    %v333 = vmul.f32 %v330, %v323
    %s334 = scalar_lea.vmem %s1, 168
    %v335 = vld [vmem:[%s334] sm:$0xff]
    %336 = vrot.lane.b32.xlu0 %v324, 127
    %v337 = vpop.permute.xlu0 %336
    %338 = vrot.lane.b32.xlu0 %v325, 127
    %v339 = vpop.permute.xlu0 %338
    %s340 = vtos %v337
    %v341 = vstv %s340
    %s343 = vtos %v339
    %v344 = vstv %s343
    %v346 = vmul.f32 %v341, %v335
    %v347 = vmul.f32 %v344, %v335
    %s348 = scalar_lea.vmem %s1, 176
    %v349 = vld [vmem:[%s348] sm:$0xff]
    %350 = vrot.lane.b32.xlu0 %v324, 126
    %v351 = vpop.permute.xlu0 %350
    %352 = vrot.lane.b32.xlu0 %v325, 126
    %v353 = vpop.permute.xlu0 %352
    %s354 = vtos %v351
    %v355 = vstv %s354
    %s357 = vtos %v353
    %v358 = vstv %s357
    %v360 = vmul.f32 %v355, %v349
    %v361 = vmul.f32 %v358, %v349
    %s362 = scalar_lea.vmem %s1, 184
    %v363 = vld [vmem:[%s362] sm:$0xff]
    %364 = vrot.lane.b32.xlu0 %v324, 125
    %v365 = vpop.permute.xlu0 %364
    %366 = vrot.lane.b32.xlu0 %v325, 125
    %v367 = vpop.permute.xlu0 %366
    %s368 = vtos %v365
    %v369 = vstv %s368
    %s371 = vtos %v367
    %v372 = vstv %s371
    %v374 = vmul.f32 %v369, %v363
    %v375 = vmul.f32 %v372, %v363
    %v376 = vadd.f32 %v332, %v346
    %v377 = vadd.f32 %v333, %v347
    %v378 = vadd.f32 %v360, %v374
    %v379 = vadd.f32 %v361, %v375
    %v380 = vadd.f32 %v376, %v378
    %v381 = vadd.f32 %v377, %v379
    %s382 = scalar_lea.vmem %s1, 192
    %v383 = vld [vmem:[%s382] sm:$0xff]
    %v384 = vrot.slane %v21, 6
    %v385 = vrot.slane %v22, 6
    %s386 = vtos %v384
    %v387 = vstv %s386
    %s389 = vtos %v385
    %v390 = vstv %s389
    %v392 = vmul.f32 %v387, %v383
    %v393 = vmul.f32 %v390, %v383
    %s394 = scalar_lea.vmem %s1, 200
    %v395 = vld [vmem:[%s394] sm:$0xff]
    %396 = vrot.lane.b32.xlu0 %v384, 127
    %v397 = vpop.permute.xlu0 %396
    %398 = vrot.lane.b32.xlu0 %v385, 127
    %v399 = vpop.permute.xlu0 %398
    %s400 = vtos %v397
    %v401 = vstv %s400
    %s403 = vtos %v399
    %v404 = vstv %s403
    %v406 = vmul.f32 %v401, %v395
    %v407 = vmul.f32 %v404, %v395
    %s408 = scalar_lea.vmem %s1, 208
    %v409 = vld [vmem:[%s408] sm:$0xff]
    %410 = vrot.lane.b32.xlu0 %v384, 126
    %v411 = vpop.permute.xlu0 %410
    %412 = vrot.lane.b32.xlu0 %v385, 126
    %v413 = vpop.permute.xlu0 %412
    %s414 = vtos %v411
    %v415 = vstv %s414
    %s417 = vtos %v413
    %v418 = vstv %s417
    %v420 = vmul.f32 %v415, %v409
    %v421 = vmul.f32 %v418, %v409
    %s422 = scalar_lea.vmem %s1, 216
    %v423 = vld [vmem:[%s422] sm:$0xff]
    %424 = vrot.lane.b32.xlu0 %v384, 125
    %v425 = vpop.permute.xlu0 %424
    %426 = vrot.lane.b32.xlu0 %v385, 125
    %v427 = vpop.permute.xlu0 %426
    %s428 = vtos %v425
    %v429 = vstv %s428
    %s431 = vtos %v427
    %v432 = vstv %s431
    %v434 = vmul.f32 %v429, %v423
    %v435 = vmul.f32 %v432, %v423
    %v436 = vadd.f32 %v392, %v406
    %v437 = vadd.f32 %v393, %v407
    %v438 = vadd.f32 %v420, %v434
    %v439 = vadd.f32 %v421, %v435
    %v440 = vadd.f32 %v436, %v438
    %v441 = vadd.f32 %v437, %v439
    %s442 = scalar_lea.vmem %s1, 224
    %v443 = vld [vmem:[%s442] sm:$0xff]
    %v444 = vrot.slane %v21, 7
    %v445 = vrot.slane %v22, 7
    %s446 = vtos %v444
    %v447 = vstv %s446
    %s449 = vtos %v445
    %v450 = vstv %s449
    %v452 = vmul.f32 %v447, %v443
    %v453 = vmul.f32 %v450, %v443
    %s454 = scalar_lea.vmem %s1, 232
    %v455 = vld [vmem:[%s454] sm:$0xff]
    %456 = vrot.lane.b32.xlu0 %v444, 127
    %v457 = vpop.permute.xlu0 %456
    %458 = vrot.lane.b32.xlu0 %v445, 127
    %v459 = vpop.permute.xlu0 %458
    %s460 = vtos %v457
    %v461 = vstv %s460
    %s463 = vtos %v459
    %v464 = vstv %s463
    %v466 = vmul.f32 %v461, %v455
    %v467 = vmul.f32 %v464, %v455
    %s468 = scalar_lea.vmem %s1, 240
    %v469 = vld [vmem:[%s468] sm:$0xff]
    %470 = vrot.lane.b32.xlu0 %v444, 126
    %v471 = vpop.permute.xlu0 %470
    %472 = vrot.lane.b32.xlu0 %v445, 126
    %v473 = vpop.permute.xlu0 %472
    %s474 = vtos %v471
    %v475 = vstv %s474
    %s477 = vtos %v473
    %v478 = vstv %s477
    %v480 = vmul.f32 %v475, %v469
    %v481 = vmul.f32 %v478, %v469
    %s482 = scalar_lea.vmem %s1, 248
    %v483 = vld [vmem:[%s482] sm:$0xff]
    %484 = vrot.lane.b32.xlu0 %v444, 125
    %v485 = vpop.permute.xlu0 %484
    %486 = vrot.lane.b32.xlu0 %v445, 125
    %v487 = vpop.permute.xlu0 %486
    %s488 = vtos %v485
    %v489 = vstv %s488
    %s491 = vtos %v487
    %v492 = vstv %s491
    %v494 = vmul.f32 %v489, %v483
    %v495 = vmul.f32 %v492, %v483
    %v496 = vadd.f32 %v452, %v466
    %v497 = vadd.f32 %v453, %v467
    %v498 = vadd.f32 %v480, %v494
    %v499 = vadd.f32 %v481, %v495
    %v500 = vadd.f32 %v496, %v498
    %v501 = vadd.f32 %v497, %v499
    %503 = vset.pattern.permute.xlu0 0
    %504 = vperm.xlu0 %503, %v80
    %v505 = vpop.permute.xlu0 %504
    %508 = vset.pattern.permute.xlu0 0
    %509 = vperm.xlu0 %508, %v81
    %v510 = vpop.permute.xlu0 %509
    %v512 = vperm.slane %v140, 0
    %v513 = vperm.slane %v141, 0
    %v514 = vmul.f32 %v505, %v512
    %v515 = vmul.f32 %v510, %v513
    %516 = vset.pattern.permute.xlu0 1
    %517 = vperm.xlu0 %516, %v80
    %v518 = vpop.permute.xlu0 %517
    %520 = vset.pattern.permute.xlu0 1
    %521 = vperm.xlu0 %520, %v81
    %v522 = vpop.permute.xlu0 %521
    %v524 = vperm.slane %v140, 1
    %v525 = vperm.slane %v141, 1
    %v526 = vmul.f32 %v518, %v524
    %v527 = vmul.f32 %v522, %v525
    %528 = vset.pattern.permute.xlu0 2
    %529 = vperm.xlu0 %528, %v80
    %v530 = vpop.permute.xlu0 %529
    %532 = vset.pattern.permute.xlu0 2
    %533 = vperm.xlu0 %532, %v81
    %v534 = vpop.permute.xlu0 %533
    %v536 = vperm.slane %v140, 2
    %v537 = vperm.slane %v141, 2
    %v538 = vmul.f32 %v530, %v536
    %v539 = vmul.f32 %v534, %v537
    %540 = vset.pattern.permute.xlu0 3
    %541 = vperm.xlu0 %540, %v80
    %v542 = vpop.permute.xlu0 %541
    %544 = vset.pattern.permute.xlu0 3
    %545 = vperm.xlu0 %544, %v81
    %v546 = vpop.permute.xlu0 %545
    %v548 = vperm.slane %v140, 3
    %v549 = vperm.slane %v141, 3
    %v550 = vmul.f32 %v542, %v548
    %v551 = vmul.f32 %v546, %v549
    %552 = vset.pattern.permute.xlu0 4
    %553 = vperm.xlu0 %552, %v80
    %v554 = vpop.permute.xlu0 %553
    %556 = vset.pattern.permute.xlu0 4
    %557 = vperm.xlu0 %556, %v81
    %v558 = vpop.permute.xlu0 %557
    %v560 = vperm.slane %v140, 4
    %v561 = vperm.slane %v141, 4
    %v562 = vmul.f32 %v554, %v560
    %v563 = vmul.f32 %v558, %v561
    %564 = vset.pattern.permute.xlu0 5
    %565 = vperm.xlu0 %564, %v80
    %v566 = vpop.permute.xlu0 %565
    %568 = vset.pattern.permute.xlu0 5
    %569 = vperm.xlu0 %568, %v81
    %v570 = vpop.permute.xlu0 %569
    %v572 = vperm.slane %v140, 5
    %v573 = vperm.slane %v141, 5
    %v574 = vmul.f32 %v566, %v572
    %v575 = vmul.f32 %v570, %v573
    %576 = vset.pattern.permute.xlu0 6
    %577 = vperm.xlu0 %576, %v80
    %v578 = vpop.permute.xlu0 %577
    %580 = vset.pattern.permute.xlu0 6
    %581 = vperm.xlu0 %580, %v81
    %v582 = vpop.permute.xlu0 %581
    %v584 = vperm.slane %v140, 6
    %v585 = vperm.slane %v141, 6
    %v586 = vmul.f32 %v578, %v584
    %v587 = vmul.f32 %v582, %v585
    %588 = vset.pattern.permute.xlu0 7
    %589 = vperm.xlu0 %588, %v80
    %v590 = vpop.permute.xlu0 %589
    %592 = vset.pattern.permute.xlu0 7
    %593 = vperm.xlu0 %592, %v81
    %v594 = vpop.permute.xlu0 %593
    %v596 = vperm.slane %v140, 7
    %v597 = vperm.slane %v141, 7
    %v598 = vmul.f32 %v590, %v596
    %v599 = vmul.f32 %v594, %v597
    %v600 = vadd.f32 %v514, %v526
    %v601 = vadd.f32 %v515, %v527
    %v602 = vadd.f32 %v538, %v550
    %v603 = vadd.f32 %v539, %v551
    %v604 = vadd.f32 %v562, %v574
    %v605 = vadd.f32 %v563, %v575
    %v606 = vadd.f32 %v586, %v598
    %v607 = vadd.f32 %v587, %v599
    %v608 = vadd.f32 %v600, %v602
    %v609 = vadd.f32 %v601, %v603
    %v610 = vadd.f32 %v604, %v606
    %v611 = vadd.f32 %v605, %v607
    %v612 = vadd.f32 %v608, %v610
    %v613 = vadd.f32 %v609, %v611
    %615 = vset.pattern.permute.xlu0 0
    %616 = vperm.xlu0 %615, %v200
    %v617 = vpop.permute.xlu0 %616
    %620 = vset.pattern.permute.xlu0 0
    %621 = vperm.xlu0 %620, %v201
    %v622 = vpop.permute.xlu0 %621
    %v624 = vperm.slane %v260, 0
    %v625 = vperm.slane %v261, 0
    %v626 = vmul.f32 %v617, %v624
    %v627 = vmul.f32 %v622, %v625
    %628 = vset.pattern.permute.xlu0 1
    %629 = vperm.xlu0 %628, %v200
    %v630 = vpop.permute.xlu0 %629
    %632 = vset.pattern.permute.xlu0 1
    %633 = vperm.xlu0 %632, %v201
    %v634 = vpop.permute.xlu0 %633
    %v636 = vperm.slane %v260, 1
    %v637 = vperm.slane %v261, 1
    %v638 = vmul.f32 %v630, %v636
    %v639 = vmul.f32 %v634, %v637
    %640 = vset.pattern.permute.xlu0 2
    %641 = vperm.xlu0 %640, %v200
    %v642 = vpop.permute.xlu0 %641
    %644 = vset.pattern.permute.xlu0 2
    %645 = vperm.xlu0 %644, %v201
    %v646 = vpop.permute.xlu0 %645
    %v648 = vperm.slane %v260, 2
    %v649 = vperm.slane %v261, 2
    %v650 = vmul.f32 %v642, %v648
    %v651 = vmul.f32 %v646, %v649
    %652 = vset.pattern.permute.xlu0 3
    %653 = vperm.xlu0 %652, %v200
    %v654 = vpop.permute.xlu0 %653
    %656 = vset.pattern.permute.xlu0 3
    %657 = vperm.xlu0 %656, %v201
    %v658 = vpop.permute.xlu0 %657
    %v660 = vperm.slane %v260, 3
    %v661 = vperm.slane %v261, 3
    %v662 = vmul.f32 %v654, %v660
    %v663 = vmul.f32 %v658, %v661
    %664 = vset.pattern.permute.xlu0 4
    %665 = vperm.xlu0 %664, %v200
    %v666 = vpop.permute.xlu0 %665
    %668 = vset.pattern.permute.xlu0 4
    %669 = vperm.xlu0 %668, %v201
    %v670 = vpop.permute.xlu0 %669
    %v672 = vperm.slane %v260, 4
    %v673 = vperm.slane %v261, 4
    %v674 = vmul.f32 %v666, %v672
    %v675 = vmul.f32 %v670, %v673
    %676 = vset.pattern.permute.xlu0 5
    %677 = vperm.xlu0 %676, %v200
    %v678 = vpop.permute.xlu0 %677
    %680 = vset.pattern.permute.xlu0 5
    %681 = vperm.xlu0 %680, %v201
    %v682 = vpop.permute.xlu0 %681
    %v684 = vperm.slane %v260, 5
    %v685 = vperm.slane %v261, 5
    %v686 = vmul.f32 %v678, %v684
    %v687 = vmul.f32 %v682, %v685
    %688 = vset.pattern.permute.xlu0 6
    %689 = vperm.xlu0 %688, %v200
    %v690 = vpop.permute.xlu0 %689
    %692 = vset.pattern.permute.xlu0 6
    %693 = vperm.xlu0 %692, %v201
    %v694 = vpop.permute.xlu0 %693
    %v696 = vperm.slane %v260, 6
    %v697 = vperm.slane %v261, 6
    %v698 = vmul.f32 %v690, %v696
    %v699 = vmul.f32 %v694, %v697
    %700 = vset.pattern.permute.xlu0 7
    %701 = vperm.xlu0 %700, %v200
    %v702 = vpop.permute.xlu0 %701
    %704 = vset.pattern.permute.xlu0 7
    %705 = vperm.xlu0 %704, %v201
    %v706 = vpop.permute.xlu0 %705
    %v708 = vperm.slane %v260, 7
    %v709 = vperm.slane %v261, 7
    %v710 = vmul.f32 %v702, %v708
    %v711 = vmul.f32 %v706, %v709
    %v712 = vadd.f32 %v626, %v638
    %v713 = vadd.f32 %v627, %v639
    %v714 = vadd.f32 %v650, %v662
    %v715 = vadd.f32 %v651, %v663
    %v716 = vadd.f32 %v674, %v686
    %v717 = vadd.f32 %v675, %v687
    %v718 = vadd.f32 %v698, %v710
    %v719 = vadd.f32 %v699, %v711
    %v720 = vadd.f32 %v712, %v714
    %v721 = vadd.f32 %v713, %v715
    %v722 = vadd.f32 %v716, %v718
    %v723 = vadd.f32 %v717, %v719
    %v724 = vadd.f32 %v720, %v722
    %v725 = vadd.f32 %v721, %v723
    %727 = vset.pattern.permute.xlu0 0
    %728 = vperm.xlu0 %727, %v320
    %v729 = vpop.permute.xlu0 %728
    %732 = vset.pattern.permute.xlu0 0
    %733 = vperm.xlu0 %732, %v321
    %v734 = vpop.permute.xlu0 %733
    %v736 = vperm.slane %v380, 0
    %v737 = vperm.slane %v381, 0
    %v738 = vmul.f32 %v729, %v736
    %v739 = vmul.f32 %v734, %v737
    %740 = vset.pattern.permute.xlu0 1
    %741 = vperm.xlu0 %740, %v320
    %v742 = vpop.permute.xlu0 %741
    %744 = vset.pattern.permute.xlu0 1
    %745 = vperm.xlu0 %744, %v321
    %v746 = vpop.permute.xlu0 %745
    %v748 = vperm.slane %v380, 1
    %v749 = vperm.slane %v381, 1
    %v750 = vmul.f32 %v742, %v748
    %v751 = vmul.f32 %v746, %v749
    %752 = vset.pattern.permute.xlu0 2
    %753 = vperm.xlu0 %752, %v320
    %v754 = vpop.permute.xlu0 %753
    %756 = vset.pattern.permute.xlu0 2
    %757 = vperm.xlu0 %756, %v321
    %v758 = vpop.permute.xlu0 %757
    %v760 = vperm.slane %v380, 2
    %v761 = vperm.slane %v381, 2
    %v762 = vmul.f32 %v754, %v760
    %v763 = vmul.f32 %v758, %v761
    %764 = vset.pattern.permute.xlu0 3
    %765 = vperm.xlu0 %764, %v320
    %v766 = vpop.permute.xlu0 %765
    %768 = vset.pattern.permute.xlu0 3
    %769 = vperm.xlu0 %768, %v321
    %v770 = vpop.permute.xlu0 %769
    %v772 = vperm.slane %v380, 3
    %v773 = vperm.slane %v381, 3
    %v774 = vmul.f32 %v766, %v772
    %v775 = vmul.f32 %v770, %v773
    %776 = vset.pattern.permute.xlu0 4
    %777 = vperm.xlu0 %776, %v320
    %v778 = vpop.permute.xlu0 %777
    %780 = vset.pattern.permute.xlu0 4
    %781 = vperm.xlu0 %780, %v321
    %v782 = vpop.permute.xlu0 %781
    %v784 = vperm.slane %v380, 4
    %v785 = vperm.slane %v381, 4
    %v786 = vmul.f32 %v778, %v784
    %v787 = vmul.f32 %v782, %v785
    %788 = vset.pattern.permute.xlu0 5
    %789 = vperm.xlu0 %788, %v320
    %v790 = vpop.permute.xlu0 %789
    %792 = vset.pattern.permute.xlu0 5
    %793 = vperm.xlu0 %792, %v321
    %v794 = vpop.permute.xlu0 %793
    %v796 = vperm.slane %v380, 5
    %v797 = vperm.slane %v381, 5
    %v798 = vmul.f32 %v790, %v796
    %v799 = vmul.f32 %v794, %v797
    %800 = vset.pattern.permute.xlu0 6
    %801 = vperm.xlu0 %800, %v320
    %v802 = vpop.permute.xlu0 %801
    %804 = vset.pattern.permute.xlu0 6
    %805 = vperm.xlu0 %804, %v321
    %v806 = vpop.permute.xlu0 %805
    %v808 = vperm.slane %v380, 6
    %v809 = vperm.slane %v381, 6
    %v810 = vmul.f32 %v802, %v808
    %v811 = vmul.f32 %v806, %v809
    %812 = vset.pattern.permute.xlu0 7
    %813 = vperm.xlu0 %812, %v320
    %v814 = vpop.permute.xlu0 %813
    %816 = vset.pattern.permute.xlu0 7
    %817 = vperm.xlu0 %816, %v321
    %v818 = vpop.permute.xlu0 %817
    %v820 = vperm.slane %v380, 7
    %v821 = vperm.slane %v381, 7
    %v822 = vmul.f32 %v814, %v820
    %v823 = vmul.f32 %v818, %v821
    %v824 = vadd.f32 %v738, %v750
    %v825 = vadd.f32 %v739, %v751
    %v826 = vadd.f32 %v762, %v774
    %v827 = vadd.f32 %v763, %v775
    %v828 = vadd.f32 %v786, %v798
    %v829 = vadd.f32 %v787, %v799
    %v830 = vadd.f32 %v810, %v822
    %v831 = vadd.f32 %v811, %v823
    %v832 = vadd.f32 %v824, %v826
    %v833 = vadd.f32 %v825, %v827
    %v834 = vadd.f32 %v828, %v830
    %v835 = vadd.f32 %v829, %v831
    %v836 = vadd.f32 %v832, %v834
    %v837 = vadd.f32 %v833, %v835
    %839 = vset.pattern.permute.xlu0 0
    %840 = vperm.xlu0 %839, %v440
    %v841 = vpop.permute.xlu0 %840
    %844 = vset.pattern.permute.xlu0 0
    %845 = vperm.xlu0 %844, %v441
    %v846 = vpop.permute.xlu0 %845
    %v848 = vperm.slane %v500, 0
    %v849 = vperm.slane %v501, 0
    %v850 = vmul.f32 %v841, %v848
    %v851 = vmul.f32 %v846, %v849
    %852 = vset.pattern.permute.xlu0 1
    %853 = vperm.xlu0 %852, %v440
    %v854 = vpop.permute.xlu0 %853
    %856 = vset.pattern.permute.xlu0 1
    %857 = vperm.xlu0 %856, %v441
    %v858 = vpop.permute.xlu0 %857
    %v860 = vperm.slane %v500, 1
    %v861 = vperm.slane %v501, 1
    %v862 = vmul.f32 %v854, %v860
    %v863 = vmul.f32 %v858, %v861
    %864 = vset.pattern.permute.xlu0 2
    %865 = vperm.xlu0 %864, %v440
    %v866 = vpop.permute.xlu0 %865
    %868 = vset.pattern.permute.xlu0 2
    %869 = vperm.xlu0 %868, %v441
    %v870 = vpop.permute.xlu0 %869
    %v872 = vperm.slane %v500, 2
    %v873 = vperm.slane %v501, 2
    %v874 = vmul.f32 %v866, %v872
    %v875 = vmul.f32 %v870, %v873
    %876 = vset.pattern.permute.xlu0 3
    %877 = vperm.xlu0 %876, %v440
    %v878 = vpop.permute.xlu0 %877
    %880 = vset.pattern.permute.xlu0 3
    %881 = vperm.xlu0 %880, %v441
    %v882 = vpop.permute.xlu0 %881
    %v884 = vperm.slane %v500, 3
    %v885 = vperm.slane %v501, 3
    %v886 = vmul.f32 %v878, %v884
    %v887 = vmul.f32 %v882, %v885
    %888 = vset.pattern.permute.xlu0 4
    %889 = vperm.xlu0 %888, %v440
    %v890 = vpop.permute.xlu0 %889
    %892 = vset.pattern.permute.xlu0 4
    %893 = vperm.xlu0 %892, %v441
    %v894 = vpop.permute.xlu0 %893
    %v896 = vperm.slane %v500, 4
    %v897 = vperm.slane %v501, 4
    %v898 = vmul.f32 %v890, %v896
    %v899 = vmul.f32 %v894, %v897
    %900 = vset.pattern.permute.xlu0 5
    %901 = vperm.xlu0 %900, %v440
    %v902 = vpop.permute.xlu0 %901
    %904 = vset.pattern.permute.xlu0 5
    %905 = vperm.xlu0 %904, %v441
    %v906 = vpop.permute.xlu0 %905
    %v908 = vperm.slane %v500, 5
    %v909 = vperm.slane %v501, 5
    %v910 = vmul.f32 %v902, %v908
    %v911 = vmul.f32 %v906, %v909
    %912 = vset.pattern.permute.xlu0 6
    %913 = vperm.xlu0 %912, %v440
    %v914 = vpop.permute.xlu0 %913
    %916 = vset.pattern.permute.xlu0 6
    %917 = vperm.xlu0 %916, %v441
    %v918 = vpop.permute.xlu0 %917
    %v920 = vperm.slane %v500, 6
    %v921 = vperm.slane %v501, 6
    %v922 = vmul.f32 %v914, %v920
    %v923 = vmul.f32 %v918, %v921
    %924 = vset.pattern.permute.xlu0 7
    %925 = vperm.xlu0 %924, %v440
    %v926 = vpop.permute.xlu0 %925
    %928 = vset.pattern.permute.xlu0 7
    %929 = vperm.xlu0 %928, %v441
    %v930 = vpop.permute.xlu0 %929
    %v932 = vperm.slane %v500, 7
    %v933 = vperm.slane %v501, 7
    %v934 = vmul.f32 %v926, %v932
    %v935 = vmul.f32 %v930, %v933
    %v936 = vadd.f32 %v850, %v862
    %v937 = vadd.f32 %v851, %v863
    %v938 = vadd.f32 %v874, %v886
    %v939 = vadd.f32 %v875, %v887
    %v940 = vadd.f32 %v898, %v910
    %v941 = vadd.f32 %v899, %v911
    %v942 = vadd.f32 %v922, %v934
    %v943 = vadd.f32 %v923, %v935
    %v944 = vadd.f32 %v936, %v938
    %v945 = vadd.f32 %v937, %v939
    %v946 = vadd.f32 %v940, %v942
    %v947 = vadd.f32 %v941, %v943
    %v948 = vadd.f32 %v944, %v946
    %v949 = vadd.f32 %v945, %v947
    %951 = vset.pattern.permute.xlu0 0
    %952 = vperm.xlu0 %951, %v612
    %v953 = vpop.permute.xlu0 %952
    %956 = vset.pattern.permute.xlu0 0
    %957 = vperm.xlu0 %956, %v613
    %v958 = vpop.permute.xlu0 %957
    %v960 = vperm.slane %v724, 0
    %v961 = vperm.slane %v725, 0
    %v962 = vmul.f32 %v953, %v960
    %v963 = vmul.f32 %v958, %v961
    %964 = vset.pattern.permute.xlu0 1
    %965 = vperm.xlu0 %964, %v612
    %v966 = vpop.permute.xlu0 %965
    %968 = vset.pattern.permute.xlu0 1
    %969 = vperm.xlu0 %968, %v613
    %v970 = vpop.permute.xlu0 %969
    %v972 = vperm.slane %v724, 1
    %v973 = vperm.slane %v725, 1
    %v974 = vmul.f32 %v966, %v972
    %v975 = vmul.f32 %v970, %v973
    %976 = vset.pattern.permute.xlu0 2
    %977 = vperm.xlu0 %976, %v612
    %v978 = vpop.permute.xlu0 %977
    %980 = vset.pattern.permute.xlu0 2
    %981 = vperm.xlu0 %980, %v613
    %v982 = vpop.permute.xlu0 %981
    %v984 = vperm.slane %v724, 2
    %v985 = vperm.slane %v725, 2
    %v986 = vmul.f32 %v978, %v984
    %v987 = vmul.f32 %v982, %v985
    %988 = vset.pattern.permute.xlu0 3
    %989 = vperm.xlu0 %988, %v612
    %v990 = vpop.permute.xlu0 %989
    %992 = vset.pattern.permute.xlu0 3
    %993 = vperm.xlu0 %992, %v613
    %v994 = vpop.permute.xlu0 %993
    %v996 = vperm.slane %v724, 3
    %v997 = vperm.slane %v725, 3
    %v998 = vmul.f32 %v990, %v996
    %v999 = vmul.f32 %v994, %v997
    %1000 = vset.pattern.permute.xlu0 4
    %1001 = vperm.xlu0 %1000, %v612
    %v1002 = vpop.permute.xlu0 %1001
    %1004 = vset.pattern.permute.xlu0 4
    %1005 = vperm.xlu0 %1004, %v613
    %v1006 = vpop.permute.xlu0 %1005
    %v1008 = vperm.slane %v724, 4
    %v1009 = vperm.slane %v725, 4
    %v1010 = vmul.f32 %v1002, %v1008
    %v1011 = vmul.f32 %v1006, %v1009
    %1012 = vset.pattern.permute.xlu0 5
    %1013 = vperm.xlu0 %1012, %v612
    %v1014 = vpop.permute.xlu0 %1013
    %1016 = vset.pattern.permute.xlu0 5
    %1017 = vperm.xlu0 %1016, %v613
    %v1018 = vpop.permute.xlu0 %1017
    %v1020 = vperm.slane %v724, 5
    %v1021 = vperm.slane %v725, 5
    %v1022 = vmul.f32 %v1014, %v1020
    %v1023 = vmul.f32 %v1018, %v1021
    %1024 = vset.pattern.permute.xlu0 6
    %1025 = vperm.xlu0 %1024, %v612
    %v1026 = vpop.permute.xlu0 %1025
    %1028 = vset.pattern.permute.xlu0 6
    %1029 = vperm.xlu0 %1028, %v613
    %v1030 = vpop.permute.xlu0 %1029
    %v1032 = vperm.slane %v724, 6
    %v1033 = vperm.slane %v725, 6
    %v1034 = vmul.f32 %v1026, %v1032
    %v1035 = vmul.f32 %v1030, %v1033
    %1036 = vset.pattern.permute.xlu0 7
    %1037 = vperm.xlu0 %1036, %v612
    %v1038 = vpop.permute.xlu0 %1037
    %1040 = vset.pattern.permute.xlu0 7
    %1041 = vperm.xlu0 %1040, %v613
    %v1042 = vpop.permute.xlu0 %1041
    %v1044 = vperm.slane %v724, 7
    %v1045 = vperm.slane %v725, 7
    %v1046 = vmul.f32 %v1038, %v1044
    %v1047 = vmul.f32 %v1042, %v1045
    %v1048 = vadd.f32 %v962, %v974
    %v1049 = vadd.f32 %v963, %v975
    %v1050 = vadd.f32 %v986, %v998
    %v1051 = vadd.f32 %v987, %v999
    %v1052 = vadd.f32 %v1010, %v1022
    %v1053 = vadd.f32 %v1011, %v1023
    %v1054 = vadd.f32 %v1034, %v1046
    %v1055 = vadd.f32 %v1035, %v1047
    %v1056 = vadd.f32 %v1048, %v1050
    %v1057 = vadd.f32 %v1049, %v1051
    %v1058 = vadd.f32 %v1052, %v1054
    %v1059 = vadd.f32 %v1053, %v1055
    %v1060 = vadd.f32 %v1056, %v1058
    %v1061 = vadd.f32 %v1057, %v1059
    %1063 = vset.pattern.permute.xlu0 0
    %1064 = vperm.xlu0 %1063, %v836
    %v1065 = vpop.permute.xlu0 %1064
    %1068 = vset.pattern.permute.xlu0 0
    %1069 = vperm.xlu0 %1068, %v837
    %v1070 = vpop.permute.xlu0 %1069
    %v1072 = vperm.slane %v948, 0
    %v1073 = vperm.slane %v949, 0
    %v1074 = vmul.f32 %v1065, %v1072
    %v1075 = vmul.f32 %v1070, %v1073
    %1076 = vset.pattern.permute.xlu0 1
    %1077 = vperm.xlu0 %1076, %v836
    %v1078 = vpop.permute.xlu0 %1077
    %1080 = vset.pattern.permute.xlu0 1
    %1081 = vperm.xlu0 %1080, %v837
    %v1082 = vpop.permute.xlu0 %1081
    %v1084 = vperm.slane %v948, 1
    %v1085 = vperm.slane %v949, 1
    %v1086 = vmul.f32 %v1078, %v1084
    %v1087 = vmul.f32 %v1082, %v1085
    %1088 = vset.pattern.permute.xlu0 2
    %1089 = vperm.xlu0 %1088, %v836
    %v1090 = vpop.permute.xlu0 %1089
    %1092 = vset.pattern.permute.xlu0 2
    %1093 = vperm.xlu0 %1092, %v837
    %v1094 = vpop.permute.xlu0 %1093
    %v1096 = vperm.slane %v948, 2
    %v1097 = vperm.slane %v949, 2
    %v1098 = vmul.f32 %v1090, %v1096
    %v1099 = vmul.f32 %v1094, %v1097
    %1100 = vset.pattern.permute.xlu0 3
    %1101 = vperm.xlu0 %1100, %v836
    %v1102 = vpop.permute.xlu0 %1101
    %1104 = vset.pattern.permute.xlu0 3
    %1105 = vperm.xlu0 %1104, %v837
    %v1106 = vpop.permute.xlu0 %1105
    %v1108 = vperm.slane %v948, 3
    %v1109 = vperm.slane %v949, 3
    %v1110 = vmul.f32 %v1102, %v1108
    %v1111 = vmul.f32 %v1106, %v1109
    %1112 = vset.pattern.permute.xlu0 4
    %1113 = vperm.xlu0 %1112, %v836
    %v1114 = vpop.permute.xlu0 %1113
    %1116 = vset.pattern.permute.xlu0 4
    %1117 = vperm.xlu0 %1116, %v837
    %v1118 = vpop.permute.xlu0 %1117
    %v1120 = vperm.slane %v948, 4
    %v1121 = vperm.slane %v949, 4
    %v1122 = vmul.f32 %v1114, %v1120
    %v1123 = vmul.f32 %v1118, %v1121
    %1124 = vset.pattern.permute.xlu0 5
    %1125 = vperm.xlu0 %1124, %v836
    %v1126 = vpop.permute.xlu0 %1125
    %1128 = vset.pattern.permute.xlu0 5
    %1129 = vperm.xlu0 %1128, %v837
    %v1130 = vpop.permute.xlu0 %1129
    %v1132 = vperm.slane %v948, 5
    %v1133 = vperm.slane %v949, 5
    %v1134 = vmul.f32 %v1126, %v1132
    %v1135 = vmul.f32 %v1130, %v1133
    %1136 = vset.pattern.permute.xlu0 6
    %1137 = vperm.xlu0 %1136, %v836
    %v1138 = vpop.permute.xlu0 %1137
    %1140 = vset.pattern.permute.xlu0 6
    %1141 = vperm.xlu0 %1140, %v837
    %v1142 = vpop.permute.xlu0 %1141
    %v1144 = vperm.slane %v948, 6
    %v1145 = vperm.slane %v949, 6
    %v1146 = vmul.f32 %v1138, %v1144
    %v1147 = vmul.f32 %v1142, %v1145
    %1148 = vset.pattern.permute.xlu0 7
    %1149 = vperm.xlu0 %1148, %v836
    %v1150 = vpop.permute.xlu0 %1149
    %1152 = vset.pattern.permute.xlu0 7
    %1153 = vperm.xlu0 %1152, %v837
    %v1154 = vpop.permute.xlu0 %1153
    %v1156 = vperm.slane %v948, 7
    %v1157 = vperm.slane %v949, 7
    %v1158 = vmul.f32 %v1150, %v1156
    %v1159 = vmul.f32 %v1154, %v1157
    %v1160 = vadd.f32 %v1074, %v1086
    %v1161 = vadd.f32 %v1075, %v1087
    %v1162 = vadd.f32 %v1098, %v1110
    %v1163 = vadd.f32 %v1099, %v1111
    %v1164 = vadd.f32 %v1122, %v1134
    %v1165 = vadd.f32 %v1123, %v1135
    %v1166 = vadd.f32 %v1146, %v1158
    %v1167 = vadd.f32 %v1147, %v1159
    %v1168 = vadd.f32 %v1160, %v1162
    %v1169 = vadd.f32 %v1161, %v1163
    %v1170 = vadd.f32 %v1164, %v1166
    %v1171 = vadd.f32 %v1165, %v1167
    %v1172 = vadd.f32 %v1168, %v1170
    %v1173 = vadd.f32 %v1169, %v1171
    %1175 = vset.pattern.permute.xlu0 0
    %1176 = vperm.xlu0 %1175, %v1060
    %v1177 = vpop.permute.xlu0 %1176
    %1180 = vset.pattern.permute.xlu0 0
    %1181 = vperm.xlu0 %1180, %v1061
    %v1182 = vpop.permute.xlu0 %1181
    %v1184 = vperm.slane %v1172, 0
    %v1185 = vperm.slane %v1173, 0
    %v1186 = vmul.f32 %v1177, %v1184
    %v1187 = vmul.f32 %v1182, %v1185
    %1188 = vset.pattern.permute.xlu0 1
    %1189 = vperm.xlu0 %1188, %v1060
    %v1190 = vpop.permute.xlu0 %1189
    %1192 = vset.pattern.permute.xlu0 1
    %1193 = vperm.xlu0 %1192, %v1061
    %v1194 = vpop.permute.xlu0 %1193
    %v1196 = vperm.slane %v1172, 1
    %v1197 = vperm.slane %v1173, 1
    %v1198 = vmul.f32 %v1190, %v1196
    %v1199 = vmul.f32 %v1194, %v1197
    %1200 = vset.pattern.permute.xlu0 2
    %1201 = vperm.xlu0 %1200, %v1060
    %v1202 = vpop.permute.xlu0 %1201
    %1204 = vset.pattern.permute.xlu0 2
    %1205 = vperm.xlu0 %1204, %v1061
    %v1206 = vpop.permute.xlu0 %1205
    %v1208 = vperm.slane %v1172, 2
    %v1209 = vperm.slane %v1173, 2
    %v1210 = vmul.f32 %v1202, %v1208
    %v1211 = vmul.f32 %v1206, %v1209
    %1212 = vset.pattern.permute.xlu0 3
    %1213 = vperm.xlu0 %1212, %v1060
    %v1214 = vpop.permute.xlu0 %1213
    %1216 = vset.pattern.permute.xlu0 3
    %1217 = vperm.xlu0 %1216, %v1061
    %v1218 = vpop.permute.xlu0 %1217
    %v1220 = vperm.slane %v1172, 3
    %v1221 = vperm.slane %v1173, 3
    %v1222 = vmul.f32 %v1214, %v1220
    %v1223 = vmul.f32 %v1218, %v1221
    %1224 = vset.pattern.permute.xlu0 4
    %1225 = vperm.xlu0 %1224, %v1060
    %v1226 = vpop.permute.xlu0 %1225
    %1228 = vset.pattern.permute.xlu0 4
    %1229 = vperm.xlu0 %1228, %v1061
    %v1230 = vpop.permute.xlu0 %1229
    %v1232 = vperm.slane %v1172, 4
    %v1233 = vperm.slane %v1173, 4
    %v1234 = vmul.f32 %v1226, %v1232
    %v1235 = vmul.f32 %v1230, %v1233
    %1236 = vset.pattern.permute.xlu0 5
    %1237 = vperm.xlu0 %1236, %v1060
    %v1238 = vpop.permute.xlu0 %1237
    %1240 = vset.pattern.permute.xlu0 5
    %1241 = vperm.xlu0 %1240, %v1061
    %v1242 = vpop.permute.xlu0 %1241
    %v1244 = vperm.slane %v1172, 5
    %v1245 = vperm.slane %v1173, 5
    %v1246 = vmul.f32 %v1238, %v1244
    %v1247 = vmul.f32 %v1242, %v1245
    %1248 = vset.pattern.permute.xlu0 6
    %1249 = vperm.xlu0 %1248, %v1060
    %v1250 = vpop.permute.xlu0 %1249
    %1252 = vset.pattern.permute.xlu0 6
    %1253 = vperm.xlu0 %1252, %v1061
    %v1254 = vpop.permute.xlu0 %1253
    %v1256 = vperm.slane %v1172, 6
    %v1257 = vperm.slane %v1173, 6
    %v1258 = vmul.f32 %v1250, %v1256
    %v1259 = vmul.f32 %v1254, %v1257
    %1260 = vset.pattern.permute.xlu0 7
    %1261 = vperm.xlu0 %1260, %v1060
    %v1262 = vpop.permute.xlu0 %1261
    %1264 = vset.pattern.permute.xlu0 7
    %1265 = vperm.xlu0 %1264, %v1061
    %v1266 = vpop.permute.xlu0 %1265
    %v1268 = vperm.slane %v1172, 7
    %v1269 = vperm.slane %v1173, 7
    %v1270 = vmul.f32 %v1262, %v1268
    %v1271 = vmul.f32 %v1266, %v1269
    %v1272 = vadd.f32 %v1186, %v1198
    %v1273 = vadd.f32 %v1187, %v1199
    %v1274 = vadd.f32 %v1210, %v1222
    %v1275 = vadd.f32 %v1211, %v1223
    %v1276 = vadd.f32 %v1234, %v1246
    %v1277 = vadd.f32 %v1235, %v1247
    %v1278 = vadd.f32 %v1258, %v1270
    %v1279 = vadd.f32 %v1259, %v1271
    %v1280 = vadd.f32 %v1272, %v1274
    %v1281 = vadd.f32 %v1273, %v1275
    %v1282 = vadd.f32 %v1276, %v1278
    %v1283 = vadd.f32 %v1277, %v1279
    %v1284 = vadd.f32 %v1280, %v1282
    %v1285 = vadd.f32 %v1281, %v1283
    %v1286 = vld [vmem:[%s2] sm:$0xff]
    %v1287 = vmul.f32 %v1284, %v1286
    %v1288 = vmul.f32 %v1285, %v1286
    %vm1289 = vcmask 64512
    %v1290 = vsel %vm1289, %v1287, 0.0
    %1291 = vadd.xlane.f32.xlu0 %v1290
    %v1292 = vpop.xlane.xlu0 %1291
    %v1293 = vsel %vm1289, %v1288, 0.0
    %1294 = vadd.xlane.f32.xlu0 %v1293
    %v1295 = vpop.xlane.xlu0 %1294
    %v1298 = vlaneseq
    %v1299 = vand.u32 %v1298, 127
    %v1300 = vperm.slane %v1292, %v1299
    %v1301 = vperm.slane %v1295, %v1299
    %vm1302 = vcmask 1041409
    %v1303 = vsel %vm1302, %v1301, %v1300
    %vm1305 = vcmask 58368
    %v1306 = vsel %vm1305, %v1303, 0.0
    %1307 = vadd.xlane.f32.xlu0 %v1306
    %v1308 = vpop.xlane.xlu0 %1307
    %v1309 = vld [vmem:[%s3] sm:$0x1]
    %v1311 = vperm.slane %v1309, 0
    %v1313 = vmul.f32 %v1308, %v1311
    %v1314 = vld [vmem:[%s4] sm:$0x1]
    %v1316 = vperm.slane %v1314, 0
    %v1318 = vadd.f32 %v1313, %v1316
    %vm1319 = vcmask 254976
    %1320 = vst.msk [vmem:[#allocation2] sm:$0x3] %vm1319, %v1318
    // Predicated region
    $region22: #{tpu_custom_call.1} parent=1 // pred_check
      _
    $region23: #{tpu_custom_call.1} parent=1 // pred_check_branch
      %1322 = sbr.rel (0) target = $region25
    $region24: #{tpu_custom_call.1} parent=1 // pred_region
      %1324 = vsyncadd [#allocation3], 0
      %s1326 = sshll.u32 [#allocation2], 4
      %s1327 = int_to_ptr.vmem [resolvable:$true] %s1326
      %s1328 = sshll.u32 %s5, 4
      %s1329 = int_to_ptr.hbm [resolvable:$true] %s1328
      %1331 = dma.vmem_to_hbm [thread:$0]  %s1327, 32, %s1329, [#allocation3]
    $region25: #{tpu_custom_call.1} parent=1 // pred_fallthru
      _
    // Predicated region
    $region26: #{tpu_custom_call.1} parent=1 // pred_check
      _
    $region27: #{tpu_custom_call.1} parent=1 // pred_check_branch
      %1333 = sbr.rel (0) target = $region29
    $region28: #{tpu_custom_call.1} parent=1 // pred_region
      %1335 = dma.done [#allocation3], 32
    $region29: #{tpu_custom_call.1} parent=1 // pred_fallthru
      _
    %1336 = vsyncpa [#allocation3], 1

</llo_original>
